<compile_context>
chip_gen: v7x
topology: tpu7x:2x2x1
jax: 0.10.0
libtpu: 0.0.40
codegen_flags: <defaults>
</compile_context>

<pallas_src>
import numpy as np

import jax
import jax.numpy as jnp
from jax.experimental import pallas as pl
from jax.experimental.pallas import tpu as pltpu


# ----------------------------------------------------------------------------
# VMEM budget (generation aware: v5e/v6e have 128 MiB, v7x has 64 MiB per TC)
# ----------------------------------------------------------------------------

def _vmem_limit_bytes():
    try:
        cap = int(pltpu.get_tpu_info().vmem_capacity_bytes)
    except Exception:
        cap = 64 * 1024 * 1024          # most conservative generation (v7x)
    return max(32 * 1024 * 1024, min((cap * 3) // 4, 96 * 1024 * 1024))


# ----------------------------------------------------------------------------
# Pallas kernel 1: ConvBlock5x5 = 5x5 'same' conv (im2col GEMM) + folded BN +
#                  ReLU + fused 2x2 average pool.
# ----------------------------------------------------------------------------

def _conv5x5_bn_relu_pool_kernel(p_ref, w_ref, scale_ref, bias_ref, o_ref):
    """
    p_ref    : (4, Mp, K)  bf16  im2col patches, grouped by 2x2 pool quadrant
    w_ref    : (K, Cout)   bf16  conv weights as a (25*Cin, Cout) matrix
    scale_ref: (1, Cout)   f32   folded BN scale = gamma / sqrt(var + eps)
    bias_ref : (1, Cout)   f32   folded BN bias  = beta - mean * scale
    o_ref    : (Mp, Cout)  bf16  pooled output (one row per pooled pixel)
    """
    w = w_ref[...]
    scale = scale_ref[...]
    bias = bias_ref[...]
    acc = jnp.zeros(o_ref.shape, dtype=jnp.float32)
    for q in range(4):                                    # the four 2x2-pool quadrants
        y = jnp.dot(p_ref[q], w, preferred_element_type=jnp.float32)   # MXU, K=25*Cin
        acc = acc + jnp.maximum(y * scale + bias, 0.0)    # BN + ReLU, then pool-sum
    o_ref[...] = (0.25 * acc).astype(o_ref.dtype)         # average pool


def _pick_block_rows(n_rows, k, itemsize=2, vmem_budget=4 * 1024 * 1024):
    """Row-tile Mp that (a) divides n_rows, (b) is a multiple of 8, (c) keeps the
    double-buffered patch tile under `vmem_budget`, preferring >=4 grid steps
    (pipeline depth) and Mp >= 256 (MXU row fill)."""
    divs = [d for d in range(8, n_rows + 1, 8) if n_rows % d == 0]
    if not divs:
        return n_rows

    def fits(m):
        return 4 * m * k * itemsize * 2 <= vmem_budget

    for m in sorted(divs, reverse=True):
        if n_rows // m >= 4 and m >= 256 and fits(m):
            return m
    for m in sorted(divs, reverse=True):
        if n_rows // m >= 2 and m >= 64 and fits(m):
            return m
    for m in sorted(divs, reverse=True):
        if fits(m):
            return m
    return divs[0]


def conv5x5_bn_relu_pool(x, w_mat, scale, bias):
    """x: (B, H, W, Cin) NHWC -> (B, H//2, W//2, Cout).

    Equivalent to ReLU(BN(conv5x5_same(x))) followed by F.avg_pool2d(kernel=2, stride=2)
    (odd trailing rows/cols are floored away exactly like PyTorch)."""
    B, H, W, Cin = x.shape
    K, Cout = w_mat.shape
    assert K == 25 * Cin
    He, We = (H // 2) * 2, (W // 2) * 2          # pool floors odd dims
    Hp, Wp = He // 2, We // 2
    n_rows = B * Hp * Wp

    # im2col in plain JAX (HBM-side layout shuffling), grouped by pool quadrant so the
    # kernel needs no in-kernel reshapes/relayouts and the output is a lane-dense slab.
    xp = jnp.pad(x, ((0, 0), (2, 2), (2, 2), (0, 0)))
    cols = [xp[:, dh:dh + He, dw:dw + We, :] for dh in range(5) for dw in range(5)]
    patches = jnp.concatenate(cols, axis=-1)                          # (B, He, We, K)
    patches = patches.reshape(B, Hp, 2, Wp, 2, K)
    patches = patches.transpose(2, 4, 0, 1, 3, 5).reshape(4, n_rows, K)

    mp = _pick_block_rows(n_rows, K, itemsize=patches.dtype.itemsize)
    grid = (n_rows // mp,)

    out2d = pl.pallas_call(
        _conv5x5_bn_relu_pool_kernel,
        out_shape=jax.ShapeDtypeStruct((n_rows, Cout), jnp.bfloat16),
        grid=grid,
        in_specs=[
            pl.BlockSpec((4, mp, K), lambda i: (0, i, 0)),
            pl.BlockSpec((K, Cout), lambda i: (0, 0)),
            pl.BlockSpec((1, Cout), lambda i: (0, 0)),
            pl.BlockSpec((1, Cout), lambda i: (0, 0)),
        ],
        out_specs=pl.BlockSpec((mp, Cout), lambda i: (i, 0)),
        compiler_params=pltpu.CompilerParams(
            dimension_semantics=("parallel",),       # independent tiles; v7x 2-TC shard
            vmem_limit_bytes=_vmem_limit_bytes(),
        ),
    )(patches, w_mat, scale, bias)
    return out2d.reshape(B, Hp, Wp, Cout)


# ----------------------------------------------------------------------------
# Pallas kernel 2: Cnn6 pooling head + fc1 + fc_transfer (Transfer_Cnn6 classifier)
# ----------------------------------------------------------------------------

def _head_kernel(x_ref, w1_ref, b1_ref, wt_ref, bt_ref, emb_ref, clip_ref):
    """
    x_ref : (B, T, F, 512) bf16 feature map after the 4th conv block
    w1_ref: (512, 512)  fc1 weight (transposed), b1_ref: (1, 512) bias
    wt_ref: (512, Cpad) fc_transfer weight (transposed, lane-padded), bt_ref: (1, Cpad)
    """
    x = x_ref[...].astype(jnp.float32)
    x = jnp.mean(x, axis=2)                                 # mean over freq -> (B, T, 512)
    x = jnp.max(x, axis=1) + jnp.mean(x, axis=1)            # time max + mean -> (B, 512)

    h = jnp.dot(x, w1_ref[...], preferred_element_type=jnp.float32) + b1_ref[...]
    h = jnp.maximum(h, 0.0)                                 # embedding (dropout = id, eval)
    emb_ref[...] = h

    z = jnp.dot(h, wt_ref[...], preferred_element_type=jnp.float32) + bt_ref[...]
    clip_ref[...] = jax.nn.sigmoid(z)


def head(x, fc1_wT, fc1_b, fct_wT, fct_b):
    # TODO(synk): tile over the time axis if feature maps ever outgrow VMEM (very long
    # clips); at Cnn6 pooling rates the whole map is tiny for typical inputs.
    B = x.shape[0]
    C = fct_wT.shape[1]
    Cpad = ((C + 127) // 128) * 128                     # lane-dense store, sliced after
    if Cpad != C:
        fct_wT = jnp.pad(fct_wT, ((0, 0), (0, Cpad - C)))
        fct_b = jnp.pad(fct_b, ((0, 0), (0, Cpad - C)))
    vmem = pl.BlockSpec(memory_space=pltpu.MemorySpace.VMEM)
    emb, clip = pl.pallas_call(
        _head_kernel,
        out_shape=(jax.ShapeDtypeStruct((B, 512), jnp.float32),
                   jax.ShapeDtypeStruct((B, Cpad), jnp.float32)),
        in_specs=[vmem, vmem, vmem, vmem, vmem],
        out_specs=(vmem, vmem),
        compiler_params=pltpu.CompilerParams(vmem_limit_bytes=_vmem_limit_bytes()),
    )(x, fc1_wT, fc1_b, fct_wT, fct_b)
    return emb, clip[:, :C]


# ----------------------------------------------------------------------------
# Plain-JAX glue: log-mel front-end (torchlibrosa Spectrogram + LogmelFilterBank)
# ----------------------------------------------------------------------------

def _hz_to_mel(f):
    f = np.asarray(f, dtype=np.float64)
    f_sp = 200.0 / 3.0
    mels = f / f_sp
    min_log_hz = 1000.0
    min_log_mel = min_log_hz / f_sp
    logstep = np.log(6.4) / 27.0
    return np.where(f >= min_log_hz,
                    min_log_mel + np.log(np.maximum(f, 1e-12) / min_log_hz) / logstep,
                    mels)


def _mel_to_hz(m):
    m = np.asarray(m, dtype=np.float64)
    f_sp = 200.0 / 3.0
    freqs = f_sp * m
    min_log_hz = 1000.0
    min_log_mel = min_log_hz / f_sp
    logstep = np.log(6.4) / 27.0
    return np.where(m >= min_log_mel,
                    min_log_hz * np.exp(logstep * (m - min_log_mel)),
                    freqs)


def mel_filterbank(sr, n_fft, n_mels, fmin, fmax):
    """librosa-style (slaney mel scale, slaney norm). Returns (n_fft//2+1, n_mels)."""
    fftfreqs = np.linspace(0.0, sr / 2.0, n_fft // 2 + 1)
    mel_pts = np.linspace(_hz_to_mel(fmin), _hz_to_mel(fmax), n_mels + 2)
    mel_f = _mel_to_hz(mel_pts)
    fdiff = np.diff(mel_f)
    ramps = mel_f[:, None] - fftfreqs[None, :]
    weights = np.zeros((n_mels, len(fftfreqs)), dtype=np.float64)
    for i in range(n_mels):
        lower = -ramps[i] / fdiff[i]
        upper = ramps[i + 2] / fdiff[i + 1]
        weights[i] = np.maximum(0.0, np.minimum(lower, upper))
    enorm = 2.0 / (mel_f[2:n_mels + 2] - mel_f[:n_mels])
    weights *= enorm[:, None]
    return weights.T.astype(np.float32)


def logmel_frontend(waveform, n_fft, hop, window, mel_W):
    """waveform: (B, L) -> log-mel (B, T, n_mels). center=True, reflect pad,
    power spectrogram, ref=1.0, amin=1e-10, top_db=None."""
    pad = n_fft // 2
    xp = jnp.pad(waveform, ((0, 0), (pad, pad)), mode='reflect')
    n_frames = (xp.shape[1] - n_fft) // hop + 1
    idx = jnp.arange(n_frames)[:, None] * hop + jnp.arange(n_fft)[None, :]
    frames = xp[:, idx]                                   # (B, T, n_fft)
    spec = jnp.fft.rfft(frames * window, axis=-1)         # (B, T, n_fft//2+1)
    power = spec.real ** 2 + spec.imag ** 2               # power spectrogram
    mel = power @ mel_W                                   # (B, T, n_mels)
    return 10.0 * jnp.log10(jnp.maximum(mel, 1e-10))


# ----------------------------------------------------------------------------
# Parameter construction (deterministic, fresh-init eval semantics)
# ----------------------------------------------------------------------------

def _xavier_uniform(key, shape, fan_in, fan_out):
    limit = float(np.sqrt(6.0 / (fan_in + fan_out)))
    return jax.random.uniform(key, shape, jnp.float32, -limit, limit)


def make_params(key, mel_bins, classes_num):
    params = {}
    bn_eps = 1e-5

    # bn0 over mel bins (eval mode, fresh init)
    params['bn0_gamma'] = jnp.ones((mel_bins,), jnp.float32)
    params['bn0_beta'] = jnp.zeros((mel_bins,), jnp.float32)
    params['bn0_mean'] = jnp.zeros((mel_bins,), jnp.float32)
    params['bn0_var'] = jnp.ones((mel_bins,), jnp.float32)

    chans = [1, 64, 128, 256, 512]
    keys = jax.random.split(key, 8)
    for i in range(4):
        cin, cout = chans[i], chans[i + 1]
        w = _xavier_uniform(keys[i], (5, 5, cin, cout), cin * 25, cout * 25)
        # im2col weight matrix (25*Cin, Cout), bf16 for MXU / HBM traffic
        params[f'conv{i + 1}_wmat'] = w.reshape(25 * cin, cout).astype(jnp.bfloat16)
        # Folded BatchNorm (gamma=1, beta=0, mean=0, var=1), kept f32
        params[f'conv{i + 1}_scale'] = jnp.full((1, cout), 1.0 / np.sqrt(1.0 + bn_eps),
                                                jnp.float32)
        params[f'conv{i + 1}_bias'] = jnp.zeros((1, cout), jnp.float32)

    # fc1: Linear(512, 512); stored transposed for y = x @ W^T + b
    params['fc1_wT'] = _xavier_uniform(keys[4], (512, 512), 512, 512)
    params['fc1_b'] = jnp.zeros((1, 512), jnp.float32)
    # fc_transfer: Linear(512, classes_num) — init_layer => xavier W, zero bias
    params['fct_wT'] = _xavier_uniform(keys[5], (512, classes_num), 512, classes_num)
    params['fct_b'] = jnp.zeros((1, classes_num), jnp.float32)
    return params


# ----------------------------------------------------------------------------
# Full forward (Transfer_Cnn6.forward, eval mode)
# ----------------------------------------------------------------------------

def transfer_cnn6_forward(waveform, params, *, n_fft, hop, window, mel_W):
    bn_eps = 1e-5
    # Spectrogram + log-mel extractor
    x = logmel_frontend(waveform, n_fft, hop, window, mel_W)     # (B, T, mel) f32
    # bn0 (BatchNorm2d over mel-bin "channels", eval mode)
    x = (x - params['bn0_mean']) / jnp.sqrt(params['bn0_var'] + bn_eps) \
        * params['bn0_gamma'] + params['bn0_beta']
    # SpecAugmentation / mixup: identity (eval, mixup_lambda=None)
    x = x[..., None].astype(jnp.bfloat16)                        # (B, T, mel, 1) NHWC

    for i in range(4):
        x = conv5x5_bn_relu_pool(x,
                                 params[f'conv{i + 1}_wmat'],
                                 params[f'conv{i + 1}_scale'],
                                 params[f'conv{i + 1}_bias'])
        # dropout p=0.2: identity in eval

    embedding, clipwise_output = head(x, params['fc1_wT'], params['fc1_b'],
                                      params['fct_wT'], params['fct_b'])
    # NOTE: the base model's fc_audioset output is overwritten by fc_transfer in
    # Transfer_Cnn6.forward, so it is intentionally not computed here.
    return {'clipwise_output': clipwise_output, 'embedding': embedding}


# ----------------------------------------------------------------------------

if __name__ == "__main__":
    # Small, shape-consistent configuration
    sample_rate = 8000
    window_size = 64          # n_fft
    hop_size = 32
    mel_bins = 32
    fmin = 0
    fmax = 4000
    classes_num = 5
    batch = 2
    data_length = 63 * hop_size   # -> 64 STFT frames (center=True)

    key = jax.random.PRNGKey(0)
    k_in, k_par = jax.random.split(key)
    waveform = 0.1 * jax.random.normal(k_in, (batch, data_length), jnp.float32)

    params = make_params(k_par, mel_bins, classes_num)

    # Periodic Hann window (torch.hann_window / librosa fftbins=True)
    n = np.arange(window_size)
    window = jnp.asarray(0.5 - 0.5 * np.cos(2.0 * np.pi * n / window_size),
                         dtype=jnp.float32)
    mel_W = jnp.asarray(mel_filterbank(sample_rate, window_size, mel_bins, fmin, fmax))

    out = transfer_cnn6_forward(waveform, params,
                                n_fft=window_size, hop=hop_size,
                                window=window, mel_W=mel_W)
    jax.block_until_ready(out)

    clip = np.asarray(out['clipwise_output'])
    emb = np.asarray(out['embedding'])
    assert clip.shape == (batch, classes_num)
    assert emb.shape == (batch, 512)
    assert np.all(np.isfinite(clip)) and np.all(np.isfinite(emb))
    assert np.all(clip >= 0.0) and np.all(clip <= 1.0)
    print("KERNEL_OK")
</pallas_src>

<mosaic_0001>
module attributes {stable_mosaic.version = 11 : i64} {
  func.func @_conv5x5_bn_relu_pool_kernel(%arg0: i32, %arg1: memref<4x256x25xbf16, #tpu.memory_space<vmem>>, %arg2: memref<25x64xbf16, #tpu.memory_space<vmem>>, %arg3: memref<1x64xf32, #tpu.memory_space<vmem>>, %arg4: memref<1x64xf32, #tpu.memory_space<vmem>>, %arg5: memref<256x64xbf16, #tpu.memory_space<vmem>>) attributes {dimension_semantics = [#tpu.dimension_semantics<parallel>], iteration_bounds = array<i64: 4>, scalar_prefetch = 0 : i64, scratch_operands = 0 : i64, tpu.core_type = #tpu.core_type<tc>, window_params = [{transform_indices = @transform_0, window_bounds = array<i64: 4, 256, 25>}, {pipeline_mode = #tpu.pipeline_mode<synchronous>, transform_indices = @transform_1, window_bounds = array<i64: 25, 64>}, {pipeline_mode = #tpu.pipeline_mode<synchronous>, transform_indices = @transform_2, window_bounds = array<i64: 1, 64>}, {pipeline_mode = #tpu.pipeline_mode<synchronous>, transform_indices = @transform_3, window_bounds = array<i64: 1, 64>}, {transform_indices = @transform_4, window_bounds = array<i64: 256, 64>}]} {
    %c0 = arith.constant 0 : index
    %c0_0 = arith.constant 0 : index
    %0 = vector.load %arg2[%c0, %c0_0] : memref<25x64xbf16, #tpu.memory_space<vmem>>, vector<25x64xbf16>
    %c0_1 = arith.constant 0 : index
    %c0_2 = arith.constant 0 : index
    %1 = vector.load %arg3[%c0_1, %c0_2] : memref<1x64xf32, #tpu.memory_space<vmem>>, vector<1x64xf32>
    %c0_3 = arith.constant 0 : index
    %c0_4 = arith.constant 0 : index
    %2 = vector.load %arg4[%c0_3, %c0_4] : memref<1x64xf32, #tpu.memory_space<vmem>>, vector<1x64xf32>
    %cst = arith.constant 0.000000e+00 : f32
    %3 = vector.broadcast %cst : f32 to vector<256x64xf32>
    %c0_5 = arith.constant 0 : index
    %c0_6 = arith.constant 0 : index
    %c0_7 = arith.constant 0 : index
    %4 = vector.load %arg1[%c0_5, %c0_6, %c0_7] : memref<4x256x25xbf16, #tpu.memory_space<vmem>>, vector<1x256x25xbf16>
    %5 = vector.shape_cast %4 : vector<1x256x25xbf16> to vector<256x25xbf16>
    %cst_8 = arith.constant dense<0.000000e+00> : vector<256x64xf32>
    %6 = tpu.matmul %5, %0, %cst_8 {dimension_numbers = #tpu.dot_dimension_numbers<[1], [0], [0], [1], [0, 0, 1, 1], [], []>} : vector<256x25xbf16>, vector<25x64xbf16>, vector<256x64xf32> -> vector<256x64xf32>
    %7 = vector.broadcast %1 : vector<1x64xf32> to vector<256x64xf32>
    %8 = arith.mulf %6, %7 : vector<256x64xf32>
    %9 = vector.broadcast %2 : vector<1x64xf32> to vector<256x64xf32>
    %10 = arith.addf %8, %9 : vector<256x64xf32>
    %cst_9 = arith.constant 0.000000e+00 : f32
    %11 = vector.broadcast %cst_9 : f32 to vector<256x64xf32>
    %12 = arith.maximumf %10, %11 : vector<256x64xf32>
    %13 = arith.addf %3, %12 : vector<256x64xf32>
    %c1 = arith.constant 1 : index
    %c0_10 = arith.constant 0 : index
    %c0_11 = arith.constant 0 : index
    %14 = vector.load %arg1[%c1, %c0_10, %c0_11] : memref<4x256x25xbf16, #tpu.memory_space<vmem>>, vector<1x256x25xbf16>
    %15 = vector.shape_cast %14 : vector<1x256x25xbf16> to vector<256x25xbf16>
    %cst_12 = arith.constant dense<0.000000e+00> : vector<256x64xf32>
    %16 = tpu.matmul %15, %0, %cst_12 {dimension_numbers = #tpu.dot_dimension_numbers<[1], [0], [0], [1], [0, 0, 1, 1], [], []>} : vector<256x25xbf16>, vector<25x64xbf16>, vector<256x64xf32> -> vector<256x64xf32>
    %17 = vector.broadcast %1 : vector<1x64xf32> to vector<256x64xf32>
    %18 = arith.mulf %16, %17 : vector<256x64xf32>
    %19 = vector.broadcast %2 : vector<1x64xf32> to vector<256x64xf32>
    %20 = arith.addf %18, %19 : vector<256x64xf32>
    %cst_13 = arith.constant 0.000000e+00 : f32
    %21 = vector.broadcast %cst_13 : f32 to vector<256x64xf32>
    %22 = arith.maximumf %20, %21 : vector<256x64xf32>
    %23 = arith.addf %13, %22 : vector<256x64xf32>
    %c2 = arith.constant 2 : index
    %c0_14 = arith.constant 0 : index
    %c0_15 = arith.constant 0 : index
    %24 = vector.load %arg1[%c2, %c0_14, %c0_15] : memref<4x256x25xbf16, #tpu.memory_space<vmem>>, vector<1x256x25xbf16>
    %25 = vector.shape_cast %24 : vector<1x256x25xbf16> to vector<256x25xbf16>
    %cst_16 = arith.constant dense<0.000000e+00> : vector<256x64xf32>
    %26 = tpu.matmul %25, %0, %cst_16 {dimension_numbers = #tpu.dot_dimension_numbers<[1], [0], [0], [1], [0, 0, 1, 1], [], []>} : vector<256x25xbf16>, vector<25x64xbf16>, vector<256x64xf32> -> vector<256x64xf32>
    %27 = vector.broadcast %1 : vector<1x64xf32> to vector<256x64xf32>
    %28 = arith.mulf %26, %27 : vector<256x64xf32>
    %29 = vector.broadcast %2 : vector<1x64xf32> to vector<256x64xf32>
    %30 = arith.addf %28, %29 : vector<256x64xf32>
    %cst_17 = arith.constant 0.000000e+00 : f32
    %31 = vector.broadcast %cst_17 : f32 to vector<256x64xf32>
    %32 = arith.maximumf %30, %31 : vector<256x64xf32>
    %33 = arith.addf %23, %32 : vector<256x64xf32>
    %c3 = arith.constant 3 : index
    %c0_18 = arith.constant 0 : index
    %c0_19 = arith.constant 0 : index
    %34 = vector.load %arg1[%c3, %c0_18, %c0_19] : memref<4x256x25xbf16, #tpu.memory_space<vmem>>, vector<1x256x25xbf16>
    %35 = vector.shape_cast %34 : vector<1x256x25xbf16> to vector<256x25xbf16>
    %cst_20 = arith.constant dense<0.000000e+00> : vector<256x64xf32>
    %36 = tpu.matmul %35, %0, %cst_20 {dimension_numbers = #tpu.dot_dimension_numbers<[1], [0], [0], [1], [0, 0, 1, 1], [], []>} : vector<256x25xbf16>, vector<25x64xbf16>, vector<256x64xf32> -> vector<256x64xf32>
    %37 = vector.broadcast %1 : vector<1x64xf32> to vector<256x64xf32>
    %38 = arith.mulf %36, %37 : vector<256x64xf32>
    %39 = vector.broadcast %2 : vector<1x64xf32> to vector<256x64xf32>
    %40 = arith.addf %38, %39 : vector<256x64xf32>
    %cst_21 = arith.constant 0.000000e+00 : f32
    %41 = vector.broadcast %cst_21 : f32 to vector<256x64xf32>
    %42 = arith.maximumf %40, %41 : vector<256x64xf32>
    %43 = arith.addf %33, %42 : vector<256x64xf32>
    %cst_22 = arith.constant 2.500000e-01 : f32
    %44 = vector.broadcast %cst_22 : f32 to vector<256x64xf32>
    %45 = arith.mulf %44, %43 : vector<256x64xf32>
    %46 = arith.truncf %45 : vector<256x64xf32> to vector<256x64xbf16>
    %c0_23 = arith.constant 0 : index
    %c0_24 = arith.constant 0 : index
    %47 = vector.load %arg5[%c0_23, %c0_24] : memref<256x64xbf16, #tpu.memory_space<vmem>>, vector<256x64xbf16>
    tpu.vector_store %arg5[%c0_23, %c0_24], %46 {strides = array<i32>} : memref<256x64xbf16, #tpu.memory_space<vmem>>, vector<256x64xbf16>,
    return
  }
  func.func @transform_0(%arg0: i32) -> (i32, i32, i32) {
    %c0_i32 = arith.constant 0 : i32
    %c0_i32_0 = arith.constant 0 : i32
    %c0_i32_1 = arith.constant 0 : i32
    return %c0_i32, %arg0, %c0_i32_0 : i32, i32, i32
  }
  func.func @transform_1(%arg0: i32) -> (i32, i32) {
    %c0_i32 = arith.constant 0 : i32
    %c0_i32_0 = arith.constant 0 : i32
    %c0_i32_1 = arith.constant 0 : i32
    return %c0_i32, %c0_i32_0 : i32, i32
  }
  func.func @transform_2(%arg0: i32) -> (i32, i32) {
    %c0_i32 = arith.constant 0 : i32
    %c0_i32_0 = arith.constant 0 : i32
    %c0_i32_1 = arith.constant 0 : i32
    return %c0_i32, %c0_i32_0 : i32, i32
  }
  func.func @transform_3(%arg0: i32) -> (i32, i32) {
    %c0_i32 = arith.constant 0 : i32
    %c0_i32_0 = arith.constant 0 : i32
    %c0_i32_1 = arith.constant 0 : i32
    return %c0_i32, %c0_i32_0 : i32, i32
  }
  func.func @transform_4(%arg0: i32) -> (i32, i32) {
    %c0_i32 = arith.constant 0 : i32
    %c0_i32_0 = arith.constant 0 : i32
    return %arg0, %c0_i32 : i32, i32
  }
}

</mosaic_0001>

<llo_original>
// kernel: tpu_custom_call.1
$region0: #{tpu_custom_call.1}
  #allocation0 [shape = 'u32[]', space=smem, size = 0x4, offset = 0x4, fixed_abs, tag = 'smem constant byte address 0x4 - core index']
  #allocation1 [shape = 'u32[144,128]{1,0:T(1,128)}', space=vmem, size = 0x12000, scoped, tag = 'internal scratch']
  %s0 = inlined_call_operand.vmem [shape: bf16[4,1024,25], index: 0, kind: input, shape index: {}]
  %s1 = inlined_call_operand.vmem [shape: bf16[25,64], index: 1, kind: input, shape index: {}]
  %s2 = inlined_call_operand.vmem [shape: f32[1,64], index: 2, kind: input, shape index: {}]
  %s3 = inlined_call_operand.vmem [shape: f32[1,64], index: 3, kind: input, shape index: {}]
  %s4 = inlined_call_operand.vmem [shape: bf16[1024,64], index: 4, kind: output, shape index: {}]
  %s5 = sld [smem:[#allocation0]]
  $region90: #{tpu_custom_call.1} parent=0
    _
  %s7 = ssub.s32 1, %s5
  %s8 = scalar_select 0, %s7, %s5
  $region1: #{tpu_custom_call.1} parent=0
    #allocation2 [shape = 'u8[524288]{0}', space=vmem, size = 0x80000, scoped, tag = 'input window, operand 0']
    loop: start=0, step=1, limit=6
    $region2: #{tpu_custom_call.1} parent=1 // loop_pre_header
      _
    $region3: #{tpu_custom_call.1} parent=1 // loop_header
      %s10 = sphi 0, %s14
      %p11 = scmp.ge.s32.totalorder %s10, 6
      %s20 = sphi 0, %s22
      %s23 = sphi 0, %s20
      %s24 = sphi 0, %s23
      %s40 = sphi 0, %s24
      %s44 = sphi 0, %s44
      %s46 = sphi 0, %s44
      %s47 = sphi 0, %s46
      %s61 = sphi 0, %s47
      %s65 = sphi 0, %s65
      %s67 = sphi 0, %s65
      %s68 = sphi 0, %s67
      %s82 = sphi 0, %s68
      %s86 = sphi 0, %s86
      %s88 = sphi 0, %s86
      %s89 = sphi 0, %s88
      %s103 = sphi 0, %s89
      %s109 = sphi 0, %s111
      %s112 = sphi 0, %s109
      %s113 = sphi 0, %s112
      %s129 = sphi 0, %s113
    $region4: #{tpu_custom_call.1} parent=1 // loop_header_branch
      %13 = sbr.rel (%p11) target = $region8
    $region5: #{tpu_custom_call.1} parent=1 // loop_body
      %s15 = ssub.s32 %s10, 1
      %s16 = ssub.s32 %s10, 2
      %s17 = sadd.s32 %s10, 1
      %s18 = ssub.s32 %s10, %s17
      %p19 = scmp.eq.s32.totalorder %s18, 0
      %s21 = sadd.s32 %s20, 1
      %s22 = scalar_select %p19, %s20, %s21
      %p25 = pneg %p19
      %p26 = scmp.eq.s32.totalorder %s10, 3
      %p27 = por %p25, %p26
      %p28 = scmp.ne.s32.totalorder %s20, %s23
      %p29 = scmp.eq.s32.totalorder %s10, 0
      %p30 = por %p28, %p29
      %p31 = scmp.ne.s32.totalorder %s20, %s23
      %p32 = scmp.eq.s32.totalorder %s15, 3
      %p33 = por %p31, %p32
      %p34 = scmp.ne.s32.totalorder %s23, %s24
      %p35 = scmp.eq.s32.totalorder %s15, 0
      %p36 = por %p34, %p35
      %p37 = scmp.ne.s32.totalorder %s23, %s24
      %p38 = scmp.eq.s32.totalorder %s16, 3
      %p39 = por %p37, %p38
      %p41 = scmp.ne.s32.totalorder %s24, %s40
      %p42 = scmp.eq.s32.totalorder %s16, 0
      %p43 = por %p41, %p42
      %s45 = sadd.s32 %s44, 1
      %p48 = scmp.eq.s32.totalorder %s10, 3
      %p49 = scmp.ne.s32.totalorder %s44, %s46
      %p50 = scmp.eq.s32.totalorder %s10, 0
      %p51 = por %p49, %p50
      %p52 = scmp.ne.s32.totalorder %s44, %s46
      %p53 = scmp.eq.s32.totalorder %s15, 3
      %p54 = por %p52, %p53
      %p55 = scmp.ne.s32.totalorder %s46, %s47
      %p56 = scmp.eq.s32.totalorder %s15, 0
      %p57 = por %p55, %p56
      %p58 = scmp.ne.s32.totalorder %s46, %s47
      %p59 = scmp.eq.s32.totalorder %s16, 3
      %p60 = por %p58, %p59
      %p62 = scmp.ne.s32.totalorder %s47, %s61
      %p63 = scmp.eq.s32.totalorder %s16, 0
      %p64 = por %p62, %p63
      %s66 = sadd.s32 %s65, 1
      %p69 = scmp.eq.s32.totalorder %s10, 3
      %p70 = scmp.ne.s32.totalorder %s65, %s67
      %p71 = scmp.eq.s32.totalorder %s10, 0
      %p72 = por %p70, %p71
      %p73 = scmp.ne.s32.totalorder %s65, %s67
      %p74 = scmp.eq.s32.totalorder %s15, 3
      %p75 = por %p73, %p74
      %p76 = scmp.ne.s32.totalorder %s67, %s68
      %p77 = scmp.eq.s32.totalorder %s15, 0
      %p78 = por %p76, %p77
      %p79 = scmp.ne.s32.totalorder %s67, %s68
      %p80 = scmp.eq.s32.totalorder %s16, 3
      %p81 = por %p79, %p80
      %p83 = scmp.ne.s32.totalorder %s68, %s82
      %p84 = scmp.eq.s32.totalorder %s16, 0
      %p85 = por %p83, %p84
      %s87 = sadd.s32 %s86, 1
      %p90 = scmp.eq.s32.totalorder %s10, 3
      %p91 = scmp.ne.s32.totalorder %s86, %s88
      %p92 = scmp.eq.s32.totalorder %s10, 0
      %p93 = por %p91, %p92
      %p94 = scmp.ne.s32.totalorder %s86, %s88
      %p95 = scmp.eq.s32.totalorder %s15, 3
      %p96 = por %p94, %p95
      %p97 = scmp.ne.s32.totalorder %s88, %s89
      %p98 = scmp.eq.s32.totalorder %s15, 0
      %p99 = por %p97, %p98
      %p100 = scmp.ne.s32.totalorder %s88, %s89
      %p101 = scmp.eq.s32.totalorder %s16, 3
      %p102 = por %p100, %p101
      %p104 = scmp.ne.s32.totalorder %s89, %s103
      %p105 = scmp.eq.s32.totalorder %s16, 0
      %p106 = por %p104, %p105
      %s107 = ssub.s32 %s10, %s17
      %p108 = scmp.eq.s32.totalorder %s107, 0
      %s110 = sadd.s32 %s109, 1
      %s111 = scalar_select %p108, %s109, %s110
      %p114 = pneg %p108
      %p115 = scmp.eq.s32.totalorder %s10, 3
      %p116 = por %p114, %p115
      %p117 = scmp.ne.s32.totalorder %s109, %s112
      %p118 = scmp.eq.s32.totalorder %s10, 0
      %p119 = por %p117, %p118
      %p120 = scmp.ne.s32.totalorder %s109, %s112
      %p121 = scmp.eq.s32.totalorder %s15, 3
      %p122 = por %p120, %p121
      %p123 = scmp.ne.s32.totalorder %s112, %s113
      %p124 = scmp.eq.s32.totalorder %s15, 0
      %p125 = por %p123, %p124
      %p126 = scmp.ne.s32.totalorder %s112, %s113
      %p127 = scmp.eq.s32.totalorder %s16, 3
      %p128 = por %p126, %p127
      %p130 = scmp.ne.s32.totalorder %s113, %s129
      %p131 = scmp.eq.s32.totalorder %s16, 0
      %p132 = por %p130, %p131
      %p133 = scmp.le.s32.totalorder 1, %s10
      %p134 = scmp.lt.s32.totalorder %s10, 5
      %p135 = pnand %p133, %p134
      %p136 = pneg %p135
      // Predicated region
      $region9: #{tpu_custom_call.1} parent=5 // pred_check
        _
      $region10: #{tpu_custom_call.1} parent=5 // pred_check_branch
        %138 = sbr.rel (%p135) target = $region12
      $region11: #{tpu_custom_call.1} parent=5 // pred_region
        %s139 = ssub.s32 %s10, 1
        // Predicated region
        $region13: #{tpu_custom_call.1} parent=11 // pred_check
          %p140 = pneg %p57
        $region14: #{tpu_custom_call.1} parent=11 // pred_check_branch
          %142 = sbr.rel (%p140) target = $region16
        $region15: #{tpu_custom_call.1} parent=11 // pred_region
          _
        $region16: #{tpu_custom_call.1} parent=11 // pred_fallthru
          _
        // Predicated region
        $region17: #{tpu_custom_call.1} parent=11 // pred_check
          %p143 = pneg %p78
        $region18: #{tpu_custom_call.1} parent=11 // pred_check_branch
          %145 = sbr.rel (%p143) target = $region20
        $region19: #{tpu_custom_call.1} parent=11 // pred_region
          _
        $region20: #{tpu_custom_call.1} parent=11 // pred_fallthru
          _
        // Predicated region
        $region21: #{tpu_custom_call.1} parent=11 // pred_check
          %p146 = pneg %p99
        $region22: #{tpu_custom_call.1} parent=11 // pred_check_branch
          %148 = sbr.rel (%p146) target = $region24
        $region23: #{tpu_custom_call.1} parent=11 // pred_region
          _
        $region24: #{tpu_custom_call.1} parent=11 // pred_fallthru
          _
      $region12: #{tpu_custom_call.1} parent=5 // pred_fallthru
        _
      %p149 = scmp.lt.s32.totalorder %s10, 4
      // Predicated region
      $region25: #{tpu_custom_call.1} parent=5 // pred_check
        %p150 = pneg %p149
      $region26: #{tpu_custom_call.1} parent=5 // pred_check_branch
        %152 = sbr.rel (%p150) target = $region28
      $region27: #{tpu_custom_call.1} parent=5 // pred_region
        // Predicated region
        $region29: #{tpu_custom_call.1} parent=27 // pred_check
          %p153 = pneg %p30
        $region30: #{tpu_custom_call.1} parent=27 // pred_check_branch
          %155 = sbr.rel (%p153) target = $region32
        $region31: #{tpu_custom_call.1} parent=27 // pred_region
          %s156 = sand.u32 %s20, 1
          %s157 = sand.u32 %s20, 1
          %s158 = smul.addr %s157, 512
          %s159 = scalar_lea.vmem [#allocation2], %s158
          %s160 = smul.u32 32, %s10
          %s161 = smul.addr %s160, 4
          %s162 = scalar_lea.vmem %s0, %s161
          // Predicated region
          $region33: #{tpu_custom_call.1} parent=31 // pred_check
            _
          $region34: #{tpu_custom_call.1} parent=31 // pred_check_branch
            %164 = sbr.rel (0) target = $region36
          $region35: #{tpu_custom_call.1} parent=31 // pred_region
            // Predicated region
            $region37: #{tpu_custom_call.1} parent=35 // pred_check
              _
            $region38: #{tpu_custom_call.1} parent=35 // pred_check_branch
              %166 = sbr.rel target = $region40
            $region39: #{tpu_custom_call.1} parent=35 // pred_region
              // Predicated region
              $region52: #{tpu_custom_call.1} parent=39 // pred_check
                _
              $region53: #{tpu_custom_call.1} parent=39 // pred_check_branch
                %435 = sbr.rel (0) target = $region55
              $region54: #{tpu_custom_call.1} parent=39 // pred_region
                loop: start=0, step=1, limit=1
                $region56: #{tpu_custom_call.1} parent=54 // loop_pre_header
                  _
                $region57: #{tpu_custom_call.1} parent=54 // loop_header
                  %s437 = sphi 0, %s441
                  %p438 = scmp.ge.s32.totalorder %s437, 1
                  %s442 = sphi %s162, %s162
                  %s443 = sphi %s159, %s159
                $region58: #{tpu_custom_call.1} parent=54 // loop_header_branch
                  %440 = sbr.rel (%p438) target = $region62
                $region59: #{tpu_custom_call.1} parent=54 // loop_body
                  _
                $region60: #{tpu_custom_call.1} parent=54 // loop_footer
                  %s441 = sadd.s32 1, %s437
                $region61: #{tpu_custom_call.1} parent=54 // loop_footer_branch
                  %436 = sbr.rel target = $region57
                $region62: #{tpu_custom_call.1} parent=54 // loop_exit
                  _
                loop: start=0, step=1, limit=1
                $region63: #{tpu_custom_call.1} parent=54 // loop_pre_header
                  _
                $region64: #{tpu_custom_call.1} parent=54 // loop_header
                  %s446 = sphi 0, %s450
                  %p447 = scmp.ge.s32.totalorder %s446, 1
                  %s451 = sphi %s162, %s162
                  %s452 = sphi %s159, %s159
                $region65: #{tpu_custom_call.1} parent=54 // loop_header_branch
                  %449 = sbr.rel (%p447) target = $region69
                $region66: #{tpu_custom_call.1} parent=54 // loop_body
                  %v453 = vld [vmem:[%s451] sm:$0xf]
                  %454 = vst [vmem:[%s452] sm:$0xf] %v453
                  %v455 = vld [vmem:[%s451 + $0x4] sm:$0xf]
                  %456 = vst [vmem:[%s452 + $0x4] sm:$0xf] %v455
                  %v457 = vld [vmem:[%s451 + $0x8] sm:$0xf]
                  %458 = vst [vmem:[%s452 + $0x8] sm:$0xf] %v457
                  %v459 = vld [vmem:[%s451 + $0xc] sm:$0xf]
                  %460 = vst [vmem:[%s452 + $0xc] sm:$0xf] %v459
                  %v461 = vld [vmem:[%s451 + $0x10] sm:$0xf]
                  %462 = vst [vmem:[%s452 + $0x10] sm:$0xf] %v461
                  %v463 = vld [vmem:[%s451 + $0x14] sm:$0xf]
                  %464 = vst [vmem:[%s452 + $0x14] sm:$0xf] %v463
                  %v465 = vld [vmem:[%s451 + $0x18] sm:$0xf]
                  %466 = vst [vmem:[%s452 + $0x18] sm:$0xf] %v465
                  %v467 = vld [vmem:[%s451 + $0x1c] sm:$0xf]
                  %468 = vst [vmem:[%s452 + $0x1c] sm:$0xf] %v467
                  %v469 = vld [vmem:[%s451 + $0x20] sm:$0xf]
                  %470 = vst [vmem:[%s452 + $0x20] sm:$0xf] %v469
                  %v471 = vld [vmem:[%s451 + $0x24] sm:$0xf]
                  %472 = vst [vmem:[%s452 + $0x24] sm:$0xf] %v471
                  %v473 = vld [vmem:[%s451 + $0x28] sm:$0xf]
                  %474 = vst [vmem:[%s452 + $0x28] sm:$0xf] %v473
                  %v475 = vld [vmem:[%s451 + $0x2c] sm:$0xf]
                  %476 = vst [vmem:[%s452 + $0x2c] sm:$0xf] %v475
                  %v477 = vld [vmem:[%s451 + $0x30] sm:$0xf]
                  %478 = vst [vmem:[%s452 + $0x30] sm:$0xf] %v477
                  %v479 = vld [vmem:[%s451 + $0x34] sm:$0xf]
                  %480 = vst [vmem:[%s452 + $0x34] sm:$0xf] %v479
                  %v481 = vld [vmem:[%s451 + $0x38] sm:$0xf]
                  %482 = vst [vmem:[%s452 + $0x38] sm:$0xf] %v481
                  %v483 = vld [vmem:[%s451 + $0x3c] sm:$0xf]
                  %484 = vst [vmem:[%s452 + $0x3c] sm:$0xf] %v483
                  %v485 = vld [vmem:[%s451 + $0x40] sm:$0xf]
                  %486 = vst [vmem:[%s452 + $0x40] sm:$0xf] %v485
                  %v487 = vld [vmem:[%s451 + $0x44] sm:$0xf]
                  %488 = vst [vmem:[%s452 + $0x44] sm:$0xf] %v487
                  %v489 = vld [vmem:[%s451 + $0x48] sm:$0xf]
                  %490 = vst [vmem:[%s452 + $0x48] sm:$0xf] %v489
                  %v491 = vld [vmem:[%s451 + $0x4c] sm:$0xf]
                  %492 = vst [vmem:[%s452 + $0x4c] sm:$0xf] %v491
                  %v493 = vld [vmem:[%s451 + $0x50] sm:$0xf]
                  %494 = vst [vmem:[%s452 + $0x50] sm:$0xf] %v493
                  %v495 = vld [vmem:[%s451 + $0x54] sm:$0xf]
                  %496 = vst [vmem:[%s452 + $0x54] sm:$0xf] %v495
                  %v497 = vld [vmem:[%s451 + $0x58] sm:$0xf]
                  %498 = vst [vmem:[%s452 + $0x58] sm:$0xf] %v497
                  %v499 = vld [vmem:[%s451 + $0x5c] sm:$0xf]
                  %500 = vst [vmem:[%s452 + $0x5c] sm:$0xf] %v499
                  %v501 = vld [vmem:[%s451 + $0x60] sm:$0xf]
                  %502 = vst [vmem:[%s452 + $0x60] sm:$0xf] %v501
                  %v503 = vld [vmem:[%s451 + $0x64] sm:$0xf]
                  %504 = vst [vmem:[%s452 + $0x64] sm:$0xf] %v503
                  %v505 = vld [vmem:[%s451 + $0x68] sm:$0xf]
                  %506 = vst [vmem:[%s452 + $0x68] sm:$0xf] %v505
                  %v507 = vld [vmem:[%s451 + $0x6c] sm:$0xf]
                  %508 = vst [vmem:[%s452 + $0x6c] sm:$0xf] %v507
                  %v509 = vld [vmem:[%s451 + $0x70] sm:$0xf]
                  %510 = vst [vmem:[%s452 + $0x70] sm:$0xf] %v509
                  %v511 = vld [vmem:[%s451 + $0x74] sm:$0xf]
                  %512 = vst [vmem:[%s452 + $0x74] sm:$0xf] %v511
                  %v513 = vld [vmem:[%s451 + $0x78] sm:$0xf]
                  %514 = vst [vmem:[%s452 + $0x78] sm:$0xf] %v513
                  %v515 = vld [vmem:[%s451 + $0x7c] sm:$0xf]
                  %516 = vst [vmem:[%s452 + $0x7c] sm:$0xf] %v515
                  %v517 = vld [vmem:[%s451 + $0x200] sm:$0xf]
                  %518 = vst [vmem:[%s452 + $0x80] sm:$0xf] %v517
                  %v519 = vld [vmem:[%s451 + $0x204] sm:$0xf]
                  %520 = vst [vmem:[%s452 + $0x84] sm:$0xf] %v519
                  %v521 = vld [vmem:[%s451 + $0x208] sm:$0xf]
                  %522 = vst [vmem:[%s452 + $0x88] sm:$0xf] %v521
                  %v523 = vld [vmem:[%s451 + $0x20c] sm:$0xf]
                  %524 = vst [vmem:[%s452 + $0x8c] sm:$0xf] %v523
                  %v525 = vld [vmem:[%s451 + $0x210] sm:$0xf]
                  %526 = vst [vmem:[%s452 + $0x90] sm:$0xf] %v525
                  %v527 = vld [vmem:[%s451 + $0x214] sm:$0xf]
                  %528 = vst [vmem:[%s452 + $0x94] sm:$0xf] %v527
                  %v529 = vld [vmem:[%s451 + $0x218] sm:$0xf]
                  %530 = vst [vmem:[%s452 + $0x98] sm:$0xf] %v529
                  %v531 = vld [vmem:[%s451 + $0x21c] sm:$0xf]
                  %532 = vst [vmem:[%s452 + $0x9c] sm:$0xf] %v531
                  %v533 = vld [vmem:[%s451 + $0x220] sm:$0xf]
                  %534 = vst [vmem:[%s452 + $0xa0] sm:$0xf] %v533
                  %v535 = vld [vmem:[%s451 + $0x224] sm:$0xf]
                  %536 = vst [vmem:[%s452 + $0xa4] sm:$0xf] %v535
                  %v537 = vld [vmem:[%s451 + $0x228] sm:$0xf]
                  %538 = vst [vmem:[%s452 + $0xa8] sm:$0xf] %v537
                  %v539 = vld [vmem:[%s451 + $0x22c] sm:$0xf]
                  %540 = vst [vmem:[%s452 + $0xac] sm:$0xf] %v539
                  %v541 = vld [vmem:[%s451 + $0x230] sm:$0xf]
                  %542 = vst [vmem:[%s452 + $0xb0] sm:$0xf] %v541
                  %v543 = vld [vmem:[%s451 + $0x234] sm:$0xf]
                  %544 = vst [vmem:[%s452 + $0xb4] sm:$0xf] %v543
                  %v545 = vld [vmem:[%s451 + $0x238] sm:$0xf]
                  %546 = vst [vmem:[%s452 + $0xb8] sm:$0xf] %v545
                  %v547 = vld [vmem:[%s451 + $0x23c] sm:$0xf]
                  %548 = vst [vmem:[%s452 + $0xbc] sm:$0xf] %v547
                  %v549 = vld [vmem:[%s451 + $0x240] sm:$0xf]
                  %550 = vst [vmem:[%s452 + $0xc0] sm:$0xf] %v549
                  %v551 = vld [vmem:[%s451 + $0x244] sm:$0xf]
                  %552 = vst [vmem:[%s452 + $0xc4] sm:$0xf] %v551
                  %v553 = vld [vmem:[%s451 + $0x248] sm:$0xf]
                  %554 = vst [vmem:[%s452 + $0xc8] sm:$0xf] %v553
                  %v555 = vld [vmem:[%s451 + $0x24c] sm:$0xf]
                  %556 = vst [vmem:[%s452 + $0xcc] sm:$0xf] %v555
                  %v557 = vld [vmem:[%s451 + $0x250] sm:$0xf]
                  %558 = vst [vmem:[%s452 + $0xd0] sm:$0xf] %v557
                  %v559 = vld [vmem:[%s451 + $0x254] sm:$0xf]
                  %560 = vst [vmem:[%s452 + $0xd4] sm:$0xf] %v559
                  %v561 = vld [vmem:[%s451 + $0x258] sm:$0xf]
                  %562 = vst [vmem:[%s452 + $0xd8] sm:$0xf] %v561
                  %v563 = vld [vmem:[%s451 + $0x25c] sm:$0xf]
                  %564 = vst [vmem:[%s452 + $0xdc] sm:$0xf] %v563
                  %v565 = vld [vmem:[%s451 + $0x260] sm:$0xf]
                  %566 = vst [vmem:[%s452 + $0xe0] sm:$0xf] %v565
                  %v567 = vld [vmem:[%s451 + $0x264] sm:$0xf]
                  %568 = vst [vmem:[%s452 + $0xe4] sm:$0xf] %v567
                  %v569 = vld [vmem:[%s451 + $0x268] sm:$0xf]
                  %570 = vst [vmem:[%s452 + $0xe8] sm:$0xf] %v569
                  %v571 = vld [vmem:[%s451 + $0x26c] sm:$0xf]
                  %572 = vst [vmem:[%s452 + $0xec] sm:$0xf] %v571
                  %v573 = vld [vmem:[%s451 + $0x270] sm:$0xf]
                  %574 = vst [vmem:[%s452 + $0xf0] sm:$0xf] %v573
                  %v575 = vld [vmem:[%s451 + $0x274] sm:$0xf]
                  %576 = vst [vmem:[%s452 + $0xf4] sm:$0xf] %v575
                  %v577 = vld [vmem:[%s451 + $0x278] sm:$0xf]
                  %578 = vst [vmem:[%s452 + $0xf8] sm:$0xf] %v577
                  %v579 = vld [vmem:[%s451 + $0x27c] sm:$0xf]
                  %580 = vst [vmem:[%s452 + $0xfc] sm:$0xf] %v579
                  %v581 = vld [vmem:[%s451 + $0x400] sm:$0xf]
                  %582 = vst [vmem:[%s452 + $0x100] sm:$0xf] %v581
                  %v583 = vld [vmem:[%s451 + $0x404] sm:$0xf]
                  %584 = vst [vmem:[%s452 + $0x104] sm:$0xf] %v583
                  %v585 = vld [vmem:[%s451 + $0x408] sm:$0xf]
                  %586 = vst [vmem:[%s452 + $0x108] sm:$0xf] %v585
                  %v587 = vld [vmem:[%s451 + $0x40c] sm:$0xf]
                  %588 = vst [vmem:[%s452 + $0x10c] sm:$0xf] %v587
                  %v589 = vld [vmem:[%s451 + $0x410] sm:$0xf]
                  %590 = vst [vmem:[%s452 + $0x110] sm:$0xf] %v589
                  %v591 = vld [vmem:[%s451 + $0x414] sm:$0xf]
                  %592 = vst [vmem:[%s452 + $0x114] sm:$0xf] %v591
                  %v593 = vld [vmem:[%s451 + $0x418] sm:$0xf]
                  %594 = vst [vmem:[%s452 + $0x118] sm:$0xf] %v593
                  %v595 = vld [vmem:[%s451 + $0x41c] sm:$0xf]
                  %596 = vst [vmem:[%s452 + $0x11c] sm:$0xf] %v595
                  %v597 = vld [vmem:[%s451 + $0x420] sm:$0xf]
                  %598 = vst [vmem:[%s452 + $0x120] sm:$0xf] %v597
                  %v599 = vld [vmem:[%s451 + $0x424] sm:$0xf]
                  %600 = vst [vmem:[%s452 + $0x124] sm:$0xf] %v599
                  %v601 = vld [vmem:[%s451 + $0x428] sm:$0xf]
                  %602 = vst [vmem:[%s452 + $0x128] sm:$0xf] %v601
                  %v603 = vld [vmem:[%s451 + $0x42c] sm:$0xf]
                  %604 = vst [vmem:[%s452 + $0x12c] sm:$0xf] %v603
                  %v605 = vld [vmem:[%s451 + $0x430] sm:$0xf]
                  %606 = vst [vmem:[%s452 + $0x130] sm:$0xf] %v605
                  %v607 = vld [vmem:[%s451 + $0x434] sm:$0xf]
                  %608 = vst [vmem:[%s452 + $0x134] sm:$0xf] %v607
                  %v609 = vld [vmem:[%s451 + $0x438] sm:$0xf]
                  %610 = vst [vmem:[%s452 + $0x138] sm:$0xf] %v609
                  %v611 = vld [vmem:[%s451 + $0x43c] sm:$0xf]
                  %612 = vst [vmem:[%s452 + $0x13c] sm:$0xf] %v611
                  %v613 = vld [vmem:[%s451 + $0x440] sm:$0xf]
                  %614 = vst [vmem:[%s452 + $0x140] sm:$0xf] %v613
                  %v615 = vld [vmem:[%s451 + $0x444] sm:$0xf]
                  %616 = vst [vmem:[%s452 + $0x144] sm:$0xf] %v615
                  %v617 = vld [vmem:[%s451 + $0x448] sm:$0xf]
                  %618 = vst [vmem:[%s452 + $0x148] sm:$0xf] %v617
                  %v619 = vld [vmem:[%s451 + $0x44c] sm:$0xf]
                  %620 = vst [vmem:[%s452 + $0x14c] sm:$0xf] %v619
                  %v621 = vld [vmem:[%s451 + $0x450] sm:$0xf]
                  %622 = vst [vmem:[%s452 + $0x150] sm:$0xf] %v621
                  %v623 = vld [vmem:[%s451 + $0x454] sm:$0xf]
                  %624 = vst [vmem:[%s452 + $0x154] sm:$0xf] %v623
                  %v625 = vld [vmem:[%s451 + $0x458] sm:$0xf]
                  %626 = vst [vmem:[%s452 + $0x158] sm:$0xf] %v625
                  %v627 = vld [vmem:[%s451 + $0x45c] sm:$0xf]
                  %628 = vst [vmem:[%s452 + $0x15c] sm:$0xf] %v627
                  %v629 = vld [vmem:[%s451 + $0x460] sm:$0xf]
                  %630 = vst [vmem:[%s452 + $0x160] sm:$0xf] %v629
                  %v631 = vld [vmem:[%s451 + $0x464] sm:$0xf]
                  %632 = vst [vmem:[%s452 + $0x164] sm:$0xf] %v631
                  %v633 = vld [vmem:[%s451 + $0x468] sm:$0xf]
                  %634 = vst [vmem:[%s452 + $0x168] sm:$0xf] %v633
                  %v635 = vld [vmem:[%s451 + $0x46c] sm:$0xf]
                  %636 = vst [vmem:[%s452 + $0x16c] sm:$0xf] %v635
                  %v637 = vld [vmem:[%s451 + $0x470] sm:$0xf]
                  %638 = vst [vmem:[%s452 + $0x170] sm:$0xf] %v637
                  %v639 = vld [vmem:[%s451 + $0x474] sm:$0xf]
                  %640 = vst [vmem:[%s452 + $0x174] sm:$0xf] %v639
                  %v641 = vld [vmem:[%s451 + $0x478] sm:$0xf]
                  %642 = vst [vmem:[%s452 + $0x178] sm:$0xf] %v641
                  %v643 = vld [vmem:[%s451 + $0x47c] sm:$0xf]
                  %644 = vst [vmem:[%s452 + $0x17c] sm:$0xf] %v643
                  %v645 = vld [vmem:[%s451 + $0x600] sm:$0xf]
                  %646 = vst [vmem:[%s452 + $0x180] sm:$0xf] %v645
                  %v647 = vld [vmem:[%s451 + $0x604] sm:$0xf]
                  %648 = vst [vmem:[%s452 + $0x184] sm:$0xf] %v647
                  %v649 = vld [vmem:[%s451 + $0x608] sm:$0xf]
                  %650 = vst [vmem:[%s452 + $0x188] sm:$0xf] %v649
                  %v651 = vld [vmem:[%s451 + $0x60c] sm:$0xf]
                  %652 = vst [vmem:[%s452 + $0x18c] sm:$0xf] %v651
                  %v653 = vld [vmem:[%s451 + $0x610] sm:$0xf]
                  %654 = vst [vmem:[%s452 + $0x190] sm:$0xf] %v653
                  %v655 = vld [vmem:[%s451 + $0x614] sm:$0xf]
                  %656 = vst [vmem:[%s452 + $0x194] sm:$0xf] %v655
                  %v657 = vld [vmem:[%s451 + $0x618] sm:$0xf]
                  %658 = vst [vmem:[%s452 + $0x198] sm:$0xf] %v657
                  %v659 = vld [vmem:[%s451 + $0x61c] sm:$0xf]
                  %660 = vst [vmem:[%s452 + $0x19c] sm:$0xf] %v659
                  %v661 = vld [vmem:[%s451 + $0x620] sm:$0xf]
                  %662 = vst [vmem:[%s452 + $0x1a0] sm:$0xf] %v661
                  %v663 = vld [vmem:[%s451 + $0x624] sm:$0xf]
                  %664 = vst [vmem:[%s452 + $0x1a4] sm:$0xf] %v663
                  %v665 = vld [vmem:[%s451 + $0x628] sm:$0xf]
                  %666 = vst [vmem:[%s452 + $0x1a8] sm:$0xf] %v665
                  %v667 = vld [vmem:[%s451 + $0x62c] sm:$0xf]
                  %668 = vst [vmem:[%s452 + $0x1ac] sm:$0xf] %v667
                  %v669 = vld [vmem:[%s451 + $0x630] sm:$0xf]
                  %670 = vst [vmem:[%s452 + $0x1b0] sm:$0xf] %v669
                  %v671 = vld [vmem:[%s451 + $0x634] sm:$0xf]
                  %672 = vst [vmem:[%s452 + $0x1b4] sm:$0xf] %v671
                  %v673 = vld [vmem:[%s451 + $0x638] sm:$0xf]
                  %674 = vst [vmem:[%s452 + $0x1b8] sm:$0xf] %v673
                  %v675 = vld [vmem:[%s451 + $0x63c] sm:$0xf]
                  %676 = vst [vmem:[%s452 + $0x1bc] sm:$0xf] %v675
                  %v677 = vld [vmem:[%s451 + $0x640] sm:$0xf]
                  %678 = vst [vmem:[%s452 + $0x1c0] sm:$0xf] %v677
                  %v679 = vld [vmem:[%s451 + $0x644] sm:$0xf]
                  %680 = vst [vmem:[%s452 + $0x1c4] sm:$0xf] %v679
                  %v681 = vld [vmem:[%s451 + $0x648] sm:$0xf]
                  %682 = vst [vmem:[%s452 + $0x1c8] sm:$0xf] %v681
                  %v683 = vld [vmem:[%s451 + $0x64c] sm:$0xf]
                  %684 = vst [vmem:[%s452 + $0x1cc] sm:$0xf] %v683
                  %v685 = vld [vmem:[%s451 + $0x650] sm:$0xf]
                  %686 = vst [vmem:[%s452 + $0x1d0] sm:$0xf] %v685
                  %v687 = vld [vmem:[%s451 + $0x654] sm:$0xf]
                  %688 = vst [vmem:[%s452 + $0x1d4] sm:$0xf] %v687
                  %v689 = vld [vmem:[%s451 + $0x658] sm:$0xf]
                  %690 = vst [vmem:[%s452 + $0x1d8] sm:$0xf] %v689
                  %v691 = vld [vmem:[%s451 + $0x65c] sm:$0xf]
                  %692 = vst [vmem:[%s452 + $0x1dc] sm:$0xf] %v691
                  %v693 = vld [vmem:[%s451 + $0x660] sm:$0xf]
                  %694 = vst [vmem:[%s452 + $0x1e0] sm:$0xf] %v693
                  %v695 = vld [vmem:[%s451 + $0x664] sm:$0xf]
                  %696 = vst [vmem:[%s452 + $0x1e4] sm:$0xf] %v695
                  %v697 = vld [vmem:[%s451 + $0x668] sm:$0xf]
                  %698 = vst [vmem:[%s452 + $0x1e8] sm:$0xf] %v697
                  %v699 = vld [vmem:[%s451 + $0x66c] sm:$0xf]
                  %700 = vst [vmem:[%s452 + $0x1ec] sm:$0xf] %v699
                  %v701 = vld [vmem:[%s451 + $0x670] sm:$0xf]
                  %702 = vst [vmem:[%s452 + $0x1f0] sm:$0xf] %v701
                  %v703 = vld [vmem:[%s451 + $0x674] sm:$0xf]
                  %704 = vst [vmem:[%s452 + $0x1f4] sm:$0xf] %v703
                  %v705 = vld [vmem:[%s451 + $0x678] sm:$0xf]
                  %706 = vst [vmem:[%s452 + $0x1f8] sm:$0xf] %v705
                  %v707 = vld [vmem:[%s451 + $0x67c] sm:$0xf]
                  %708 = vst [vmem:[%s452 + $0x1fc] sm:$0xf] %v707
                $region67: #{tpu_custom_call.1} parent=54 // loop_footer
                  %s450 = sadd.s32 1, %s446
                $region68: #{tpu_custom_call.1} parent=54 // loop_footer_branch
                  %445 = sbr.rel target = $region64
                $region69: #{tpu_custom_call.1} parent=54 // loop_exit
                  _
              $region55: #{tpu_custom_call.1} parent=39 // pred_fallthru
                _
            $region40: #{tpu_custom_call.1} parent=35 // pred_fallthru
              _
            // Predicated region
            $region41: #{tpu_custom_call.1} parent=35 // pred_check
              _
            $region42: #{tpu_custom_call.1} parent=35 // pred_check_branch
              %168 = sbr.rel (0) target = $region44
            $region43: #{tpu_custom_call.1} parent=35 // pred_region
              loop: start=0, step=1, limit=1
              $region45: #{tpu_custom_call.1} parent=43 // loop_pre_header
                _
              $region46: #{tpu_custom_call.1} parent=43 // loop_header
                %s171 = sphi 0, %s175
                %p172 = scmp.ge.s32.totalorder %s171, 1
                %s176 = sphi %s162, %s162
                %s177 = sphi %s159, %s159
              $region47: #{tpu_custom_call.1} parent=43 // loop_header_branch
                %174 = sbr.rel (%p172) target = $region51
              $region48: #{tpu_custom_call.1} parent=43 // loop_body
                %v178 = vld [vmem:[%s176] sm:$0xf]
                %179 = vst [vmem:[%s177] sm:$0xf] %v178
                %v180 = vld [vmem:[%s176 + $0x4] sm:$0xf]
                %181 = vst [vmem:[%s177 + $0x4] sm:$0xf] %v180
                %v182 = vld [vmem:[%s176 + $0x8] sm:$0xf]
                %183 = vst [vmem:[%s177 + $0x8] sm:$0xf] %v182
                %v184 = vld [vmem:[%s176 + $0xc] sm:$0xf]
                %185 = vst [vmem:[%s177 + $0xc] sm:$0xf] %v184
                %v186 = vld [vmem:[%s176 + $0x10] sm:$0xf]
                %187 = vst [vmem:[%s177 + $0x10] sm:$0xf] %v186
                %v188 = vld [vmem:[%s176 + $0x14] sm:$0xf]
                %189 = vst [vmem:[%s177 + $0x14] sm:$0xf] %v188
                %v190 = vld [vmem:[%s176 + $0x18] sm:$0xf]
                %191 = vst [vmem:[%s177 + $0x18] sm:$0xf] %v190
                %v192 = vld [vmem:[%s176 + $0x1c] sm:$0xf]
                %193 = vst [vmem:[%s177 + $0x1c] sm:$0xf] %v192
                %v194 = vld [vmem:[%s176 + $0x20] sm:$0xf]
                %195 = vst [vmem:[%s177 + $0x20] sm:$0xf] %v194
                %v196 = vld [vmem:[%s176 + $0x24] sm:$0xf]
                %197 = vst [vmem:[%s177 + $0x24] sm:$0xf] %v196
                %v198 = vld [vmem:[%s176 + $0x28] sm:$0xf]
                %199 = vst [vmem:[%s177 + $0x28] sm:$0xf] %v198
                %v200 = vld [vmem:[%s176 + $0x2c] sm:$0xf]
                %201 = vst [vmem:[%s177 + $0x2c] sm:$0xf] %v200
                %v202 = vld [vmem:[%s176 + $0x30] sm:$0xf]
                %203 = vst [vmem:[%s177 + $0x30] sm:$0xf] %v202
                %v204 = vld [vmem:[%s176 + $0x34] sm:$0xf]
                %205 = vst [vmem:[%s177 + $0x34] sm:$0xf] %v204
                %v206 = vld [vmem:[%s176 + $0x38] sm:$0xf]
                %207 = vst [vmem:[%s177 + $0x38] sm:$0xf] %v206
                %v208 = vld [vmem:[%s176 + $0x3c] sm:$0xf]
                %209 = vst [vmem:[%s177 + $0x3c] sm:$0xf] %v208
                %v210 = vld [vmem:[%s176 + $0x40] sm:$0xf]
                %211 = vst [vmem:[%s177 + $0x40] sm:$0xf] %v210
                %v212 = vld [vmem:[%s176 + $0x44] sm:$0xf]
                %213 = vst [vmem:[%s177 + $0x44] sm:$0xf] %v212
                %v214 = vld [vmem:[%s176 + $0x48] sm:$0xf]
                %215 = vst [vmem:[%s177 + $0x48] sm:$0xf] %v214
                %v216 = vld [vmem:[%s176 + $0x4c] sm:$0xf]
                %217 = vst [vmem:[%s177 + $0x4c] sm:$0xf] %v216
                %v218 = vld [vmem:[%s176 + $0x50] sm:$0xf]
                %219 = vst [vmem:[%s177 + $0x50] sm:$0xf] %v218
                %v220 = vld [vmem:[%s176 + $0x54] sm:$0xf]
                %221 = vst [vmem:[%s177 + $0x54] sm:$0xf] %v220
                %v222 = vld [vmem:[%s176 + $0x58] sm:$0xf]
                %223 = vst [vmem:[%s177 + $0x58] sm:$0xf] %v222
                %v224 = vld [vmem:[%s176 + $0x5c] sm:$0xf]
                %225 = vst [vmem:[%s177 + $0x5c] sm:$0xf] %v224
                %v226 = vld [vmem:[%s176 + $0x60] sm:$0xf]
                %227 = vst [vmem:[%s177 + $0x60] sm:$0xf] %v226
                %v228 = vld [vmem:[%s176 + $0x64] sm:$0xf]
                %229 = vst [vmem:[%s177 + $0x64] sm:$0xf] %v228
                %v230 = vld [vmem:[%s176 + $0x68] sm:$0xf]
                %231 = vst [vmem:[%s177 + $0x68] sm:$0xf] %v230
                %v232 = vld [vmem:[%s176 + $0x6c] sm:$0xf]
                %233 = vst [vmem:[%s177 + $0x6c] sm:$0xf] %v232
                %v234 = vld [vmem:[%s176 + $0x70] sm:$0xf]
                %235 = vst [vmem:[%s177 + $0x70] sm:$0xf] %v234
                %v236 = vld [vmem:[%s176 + $0x74] sm:$0xf]
                %237 = vst [vmem:[%s177 + $0x74] sm:$0xf] %v236
                %v238 = vld [vmem:[%s176 + $0x78] sm:$0xf]
                %239 = vst [vmem:[%s177 + $0x78] sm:$0xf] %v238
                %v240 = vld [vmem:[%s176 + $0x7c] sm:$0xf]
                %241 = vst [vmem:[%s177 + $0x7c] sm:$0xf] %v240
                %v242 = vld [vmem:[%s176 + $0x200] sm:$0xf]
                %243 = vst [vmem:[%s177 + $0x80] sm:$0xf] %v242
                %v244 = vld [vmem:[%s176 + $0x204] sm:$0xf]
                %245 = vst [vmem:[%s177 + $0x84] sm:$0xf] %v244
                %v246 = vld [vmem:[%s176 + $0x208] sm:$0xf]
                %247 = vst [vmem:[%s177 + $0x88] sm:$0xf] %v246
                %v248 = vld [vmem:[%s176 + $0x20c] sm:$0xf]
                %249 = vst [vmem:[%s177 + $0x8c] sm:$0xf] %v248
                %v250 = vld [vmem:[%s176 + $0x210] sm:$0xf]
                %251 = vst [vmem:[%s177 + $0x90] sm:$0xf] %v250
                %v252 = vld [vmem:[%s176 + $0x214] sm:$0xf]
                %253 = vst [vmem:[%s177 + $0x94] sm:$0xf] %v252
                %v254 = vld [vmem:[%s176 + $0x218] sm:$0xf]
                %255 = vst [vmem:[%s177 + $0x98] sm:$0xf] %v254
                %v256 = vld [vmem:[%s176 + $0x21c] sm:$0xf]
                %257 = vst [vmem:[%s177 + $0x9c] sm:$0xf] %v256
                %v258 = vld [vmem:[%s176 + $0x220] sm:$0xf]
                %259 = vst [vmem:[%s177 + $0xa0] sm:$0xf] %v258
                %v260 = vld [vmem:[%s176 + $0x224] sm:$0xf]
                %261 = vst [vmem:[%s177 + $0xa4] sm:$0xf] %v260
                %v262 = vld [vmem:[%s176 + $0x228] sm:$0xf]
                %263 = vst [vmem:[%s177 + $0xa8] sm:$0xf] %v262
                %v264 = vld [vmem:[%s176 + $0x22c] sm:$0xf]
                %265 = vst [vmem:[%s177 + $0xac] sm:$0xf] %v264
                %v266 = vld [vmem:[%s176 + $0x230] sm:$0xf]
                %267 = vst [vmem:[%s177 + $0xb0] sm:$0xf] %v266
                %v268 = vld [vmem:[%s176 + $0x234] sm:$0xf]
                %269 = vst [vmem:[%s177 + $0xb4] sm:$0xf] %v268
                %v270 = vld [vmem:[%s176 + $0x238] sm:$0xf]
                %271 = vst [vmem:[%s177 + $0xb8] sm:$0xf] %v270
                %v272 = vld [vmem:[%s176 + $0x23c] sm:$0xf]
                %273 = vst [vmem:[%s177 + $0xbc] sm:$0xf] %v272
                %v274 = vld [vmem:[%s176 + $0x240] sm:$0xf]
                %275 = vst [vmem:[%s177 + $0xc0] sm:$0xf] %v274
                %v276 = vld [vmem:[%s176 + $0x244] sm:$0xf]
                %277 = vst [vmem:[%s177 + $0xc4] sm:$0xf] %v276
                %v278 = vld [vmem:[%s176 + $0x248] sm:$0xf]
                %279 = vst [vmem:[%s177 + $0xc8] sm:$0xf] %v278
                %v280 = vld [vmem:[%s176 + $0x24c] sm:$0xf]
                %281 = vst [vmem:[%s177 + $0xcc] sm:$0xf] %v280
                %v282 = vld [vmem:[%s176 + $0x250] sm:$0xf]
                %283 = vst [vmem:[%s177 + $0xd0] sm:$0xf] %v282
                %v284 = vld [vmem:[%s176 + $0x254] sm:$0xf]
                %285 = vst [vmem:[%s177 + $0xd4] sm:$0xf] %v284
                %v286 = vld [vmem:[%s176 + $0x258] sm:$0xf]
                %287 = vst [vmem:[%s177 + $0xd8] sm:$0xf] %v286
                %v288 = vld [vmem:[%s176 + $0x25c] sm:$0xf]
                %289 = vst [vmem:[%s177 + $0xdc] sm:$0xf] %v288
                %v290 = vld [vmem:[%s176 + $0x260] sm:$0xf]
                %291 = vst [vmem:[%s177 + $0xe0] sm:$0xf] %v290
                %v292 = vld [vmem:[%s176 + $0x264] sm:$0xf]
                %293 = vst [vmem:[%s177 + $0xe4] sm:$0xf] %v292
                %v294 = vld [vmem:[%s176 + $0x268] sm:$0xf]
                %295 = vst [vmem:[%s177 + $0xe8] sm:$0xf] %v294
                %v296 = vld [vmem:[%s176 + $0x26c] sm:$0xf]
                %297 = vst [vmem:[%s177 + $0xec] sm:$0xf] %v296
                %v298 = vld [vmem:[%s176 + $0x270] sm:$0xf]
                %299 = vst [vmem:[%s177 + $0xf0] sm:$0xf] %v298
                %v300 = vld [vmem:[%s176 + $0x274] sm:$0xf]
                %301 = vst [vmem:[%s177 + $0xf4] sm:$0xf] %v300
                %v302 = vld [vmem:[%s176 + $0x278] sm:$0xf]
                %303 = vst [vmem:[%s177 + $0xf8] sm:$0xf] %v302
                %v304 = vld [vmem:[%s176 + $0x27c] sm:$0xf]
                %305 = vst [vmem:[%s177 + $0xfc] sm:$0xf] %v304
                %v306 = vld [vmem:[%s176 + $0x400] sm:$0xf]
                %307 = vst [vmem:[%s177 + $0x100] sm:$0xf] %v306
                %v308 = vld [vmem:[%s176 + $0x404] sm:$0xf]
                %309 = vst [vmem:[%s177 + $0x104] sm:$0xf] %v308
                %v310 = vld [vmem:[%s176 + $0x408] sm:$0xf]
                %311 = vst [vmem:[%s177 + $0x108] sm:$0xf] %v310
                %v312 = vld [vmem:[%s176 + $0x40c] sm:$0xf]
                %313 = vst [vmem:[%s177 + $0x10c] sm:$0xf] %v312
                %v314 = vld [vmem:[%s176 + $0x410] sm:$0xf]
                %315 = vst [vmem:[%s177 + $0x110] sm:$0xf] %v314
                %v316 = vld [vmem:[%s176 + $0x414] sm:$0xf]
                %317 = vst [vmem:[%s177 + $0x114] sm:$0xf] %v316
                %v318 = vld [vmem:[%s176 + $0x418] sm:$0xf]
                %319 = vst [vmem:[%s177 + $0x118] sm:$0xf] %v318
                %v320 = vld [vmem:[%s176 + $0x41c] sm:$0xf]
                %321 = vst [vmem:[%s177 + $0x11c] sm:$0xf] %v320
                %v322 = vld [vmem:[%s176 + $0x420] sm:$0xf]
                %323 = vst [vmem:[%s177 + $0x120] sm:$0xf] %v322
                %v324 = vld [vmem:[%s176 + $0x424] sm:$0xf]
                %325 = vst [vmem:[%s177 + $0x124] sm:$0xf] %v324
                %v326 = vld [vmem:[%s176 + $0x428] sm:$0xf]
                %327 = vst [vmem:[%s177 + $0x128] sm:$0xf] %v326
                %v328 = vld [vmem:[%s176 + $0x42c] sm:$0xf]
                %329 = vst [vmem:[%s177 + $0x12c] sm:$0xf] %v328
                %v330 = vld [vmem:[%s176 + $0x430] sm:$0xf]
                %331 = vst [vmem:[%s177 + $0x130] sm:$0xf] %v330
                %v332 = vld [vmem:[%s176 + $0x434] sm:$0xf]
                %333 = vst [vmem:[%s177 + $0x134] sm:$0xf] %v332
                %v334 = vld [vmem:[%s176 + $0x438] sm:$0xf]
                %335 = vst [vmem:[%s177 + $0x138] sm:$0xf] %v334
                %v336 = vld [vmem:[%s176 + $0x43c] sm:$0xf]
                %337 = vst [vmem:[%s177 + $0x13c] sm:$0xf] %v336
                %v338 = vld [vmem:[%s176 + $0x440] sm:$0xf]
                %339 = vst [vmem:[%s177 + $0x140] sm:$0xf] %v338
                %v340 = vld [vmem:[%s176 + $0x444] sm:$0xf]
                %341 = vst [vmem:[%s177 + $0x144] sm:$0xf] %v340
                %v342 = vld [vmem:[%s176 + $0x448] sm:$0xf]
                %343 = vst [vmem:[%s177 + $0x148] sm:$0xf] %v342
                %v344 = vld [vmem:[%s176 + $0x44c] sm:$0xf]
                %345 = vst [vmem:[%s177 + $0x14c] sm:$0xf] %v344
                %v346 = vld [vmem:[%s176 + $0x450] sm:$0xf]
                %347 = vst [vmem:[%s177 + $0x150] sm:$0xf] %v346
                %v348 = vld [vmem:[%s176 + $0x454] sm:$0xf]
                %349 = vst [vmem:[%s177 + $0x154] sm:$0xf] %v348
                %v350 = vld [vmem:[%s176 + $0x458] sm:$0xf]
                %351 = vst [vmem:[%s177 + $0x158] sm:$0xf] %v350
                %v352 = vld [vmem:[%s176 + $0x45c] sm:$0xf]
                %353 = vst [vmem:[%s177 + $0x15c] sm:$0xf] %v352
                %v354 = vld [vmem:[%s176 + $0x460] sm:$0xf]
                %355 = vst [vmem:[%s177 + $0x160] sm:$0xf] %v354
                %v356 = vld [vmem:[%s176 + $0x464] sm:$0xf]
                %357 = vst [vmem:[%s177 + $0x164] sm:$0xf] %v356
                %v358 = vld [vmem:[%s176 + $0x468] sm:$0xf]
                %359 = vst [vmem:[%s177 + $0x168] sm:$0xf] %v358
                %v360 = vld [vmem:[%s176 + $0x46c] sm:$0xf]
                %361 = vst [vmem:[%s177 + $0x16c] sm:$0xf] %v360
                %v362 = vld [vmem:[%s176 + $0x470] sm:$0xf]
                %363 = vst [vmem:[%s177 + $0x170] sm:$0xf] %v362
                %v364 = vld [vmem:[%s176 + $0x474] sm:$0xf]
                %365 = vst [vmem:[%s177 + $0x174] sm:$0xf] %v364
                %v366 = vld [vmem:[%s176 + $0x478] sm:$0xf]
                %367 = vst [vmem:[%s177 + $0x178] sm:$0xf] %v366
                %v368 = vld [vmem:[%s176 + $0x47c] sm:$0xf]
                %369 = vst [vmem:[%s177 + $0x17c] sm:$0xf] %v368
                %v370 = vld [vmem:[%s176 + $0x600] sm:$0xf]
                %371 = vst [vmem:[%s177 + $0x180] sm:$0xf] %v370
                %v372 = vld [vmem:[%s176 + $0x604] sm:$0xf]
                %373 = vst [vmem:[%s177 + $0x184] sm:$0xf] %v372
                %v374 = vld [vmem:[%s176 + $0x608] sm:$0xf]
                %375 = vst [vmem:[%s177 + $0x188] sm:$0xf] %v374
                %v376 = vld [vmem:[%s176 + $0x60c] sm:$0xf]
                %377 = vst [vmem:[%s177 + $0x18c] sm:$0xf] %v376
                %v378 = vld [vmem:[%s176 + $0x610] sm:$0xf]
                %379 = vst [vmem:[%s177 + $0x190] sm:$0xf] %v378
                %v380 = vld [vmem:[%s176 + $0x614] sm:$0xf]
                %381 = vst [vmem:[%s177 + $0x194] sm:$0xf] %v380
                %v382 = vld [vmem:[%s176 + $0x618] sm:$0xf]
                %383 = vst [vmem:[%s177 + $0x198] sm:$0xf] %v382
                %v384 = vld [vmem:[%s176 + $0x61c] sm:$0xf]
                %385 = vst [vmem:[%s177 + $0x19c] sm:$0xf] %v384
                %v386 = vld [vmem:[%s176 + $0x620] sm:$0xf]
                %387 = vst [vmem:[%s177 + $0x1a0] sm:$0xf] %v386
                %v388 = vld [vmem:[%s176 + $0x624] sm:$0xf]
                %389 = vst [vmem:[%s177 + $0x1a4] sm:$0xf] %v388
                %v390 = vld [vmem:[%s176 + $0x628] sm:$0xf]
                %391 = vst [vmem:[%s177 + $0x1a8] sm:$0xf] %v390
                %v392 = vld [vmem:[%s176 + $0x62c] sm:$0xf]
                %393 = vst [vmem:[%s177 + $0x1ac] sm:$0xf] %v392
                %v394 = vld [vmem:[%s176 + $0x630] sm:$0xf]
                %395 = vst [vmem:[%s177 + $0x1b0] sm:$0xf] %v394
                %v396 = vld [vmem:[%s176 + $0x634] sm:$0xf]
                %397 = vst [vmem:[%s177 + $0x1b4] sm:$0xf] %v396
                %v398 = vld [vmem:[%s176 + $0x638] sm:$0xf]
                %399 = vst [vmem:[%s177 + $0x1b8] sm:$0xf] %v398
                %v400 = vld [vmem:[%s176 + $0x63c] sm:$0xf]
                %401 = vst [vmem:[%s177 + $0x1bc] sm:$0xf] %v400
                %v402 = vld [vmem:[%s176 + $0x640] sm:$0xf]
                %403 = vst [vmem:[%s177 + $0x1c0] sm:$0xf] %v402
                %v404 = vld [vmem:[%s176 + $0x644] sm:$0xf]
                %405 = vst [vmem:[%s177 + $0x1c4] sm:$0xf] %v404
                %v406 = vld [vmem:[%s176 + $0x648] sm:$0xf]
                %407 = vst [vmem:[%s177 + $0x1c8] sm:$0xf] %v406
                %v408 = vld [vmem:[%s176 + $0x64c] sm:$0xf]
                %409 = vst [vmem:[%s177 + $0x1cc] sm:$0xf] %v408
                %v410 = vld [vmem:[%s176 + $0x650] sm:$0xf]
                %411 = vst [vmem:[%s177 + $0x1d0] sm:$0xf] %v410
                %v412 = vld [vmem:[%s176 + $0x654] sm:$0xf]
                %413 = vst [vmem:[%s177 + $0x1d4] sm:$0xf] %v412
                %v414 = vld [vmem:[%s176 + $0x658] sm:$0xf]
                %415 = vst [vmem:[%s177 + $0x1d8] sm:$0xf] %v414
                %v416 = vld [vmem:[%s176 + $0x65c] sm:$0xf]
                %417 = vst [vmem:[%s177 + $0x1dc] sm:$0xf] %v416
                %v418 = vld [vmem:[%s176 + $0x660] sm:$0xf]
                %419 = vst [vmem:[%s177 + $0x1e0] sm:$0xf] %v418
                %v420 = vld [vmem:[%s176 + $0x664] sm:$0xf]
                %421 = vst [vmem:[%s177 + $0x1e4] sm:$0xf] %v420
                %v422 = vld [vmem:[%s176 + $0x668] sm:$0xf]
                %423 = vst [vmem:[%s177 + $0x1e8] sm:$0xf] %v422
                %v424 = vld [vmem:[%s176 + $0x66c] sm:$0xf]
                %425 = vst [vmem:[%s177 + $0x1ec] sm:$0xf] %v424
                %v426 = vld [vmem:[%s176 + $0x670] sm:$0xf]
                %427 = vst [vmem:[%s177 + $0x1f0] sm:$0xf] %v426
                %v428 = vld [vmem:[%s176 + $0x674] sm:$0xf]
                %429 = vst [vmem:[%s177 + $0x1f4] sm:$0xf] %v428
                %v430 = vld [vmem:[%s176 + $0x678] sm:$0xf]
                %431 = vst [vmem:[%s177 + $0x1f8] sm:$0xf] %v430
                %v432 = vld [vmem:[%s176 + $0x67c] sm:$0xf]
                %433 = vst [vmem:[%s177 + $0x1fc] sm:$0xf] %v432
              $region49: #{tpu_custom_call.1} parent=43 // loop_footer
                %s175 = sadd.s32 1, %s171
              $region50: #{tpu_custom_call.1} parent=43 // loop_footer_branch
                %170 = sbr.rel target = $region46
              $region51: #{tpu_custom_call.1} parent=43 // loop_exit
                _
            $region44: #{tpu_custom_call.1} parent=35 // pred_fallthru
              _
          $region36: #{tpu_custom_call.1} parent=31 // pred_fallthru
            _
          %709 = vnop
        $region32: #{tpu_custom_call.1} parent=27 // pred_fallthru
          _
      $region28: #{tpu_custom_call.1} parent=5 // pred_fallthru
        _
      %p710 = scmp.le.s32.totalorder 1, %s10
      %p711 = scmp.lt.s32.totalorder %s10, 5
      %p712 = pnand %p710, %p711
      %p713 = pneg %p712
      // Predicated region
      $region70: #{tpu_custom_call.1} parent=5 // pred_check
        _
      $region71: #{tpu_custom_call.1} parent=5 // pred_check_branch
        %715 = sbr.rel (%p712) target = $region73
      $region72: #{tpu_custom_call.1} parent=5 // pred_region
        %s716 = ssub.s32 %s10, 1
        %s717 = sand.u32 %s23, 1
        %s718 = sand.u32 %s23, 1
        %s719 = smul.addr %s718, 512
        %s720 = scalar_lea.vmem [#allocation2], %s719
        // Predicated region
        $region74: #{tpu_custom_call.1} parent=72 // pred_check
          %p721 = pneg %p36
        $region75: #{tpu_custom_call.1} parent=72 // pred_check_branch
          %723 = sbr.rel (%p721) target = $region77
        $region76: #{tpu_custom_call.1} parent=72 // pred_region
          _
        $region77: #{tpu_custom_call.1} parent=72 // pred_fallthru
          _
        %s724 = sand.u32 %s23, 1
        %s725 = sand.u32 %s23, 1
        %s726 = smul.addr %s725, 512
        %s727 = scalar_lea.vmem [#allocation2], %s726
        %p728 = pneg %p36
        %p729 = pneg %p33
        %p730 = pneg %p57
        %p731 = pneg %p54
        %p732 = pneg %p78
        %p733 = pneg %p75
        %p734 = pneg %p99
        %p735 = pneg %p96
        %p736 = pneg %p125
        %p737 = pneg %p122
        %s738 = smul.u32 32, %s15
        %p739 = scmp.lt.s32.totalorder %s738, 127
        %s740 = scalar_select %p739, %s738, 127
        %s741 = smul.addr %s740, 4
        %s742 = scalar_lea.vmem %s4, %s741
        %s743 = smul.u32 32, %s15
        %s744 = smul.u32 32, %s15
        %p745 = scmp.lt.s32.totalorder %s744, 127
        %s746 = scalar_select %p745, %s744, 127
        %s747 = smul.addr %s746, 4
        %s748 = scalar_lea.vmem %s4, %s747
        %s749 = smul.u32 32, %s15
        %v751 = vld [vmem:[%s1] sm:$0xf]
        %v752 = vld [vmem:[%s1 + $0x4] sm:$0xf]
        %v753 = vld [vmem:[%s1 + $0x8] sm:$0xf]
        %v754 = vld [vmem:[%s1 + $0xc] sm:$0x1]
        %v755 = vld [vmem:[%s2] sm:$0x1]
        %v756 = vld [vmem:[%s3] sm:$0x1]
        %v757 = vld [vmem:[%s720] sm:$0xf]
        %v758 = vld [vmem:[%s720 + $0x4] sm:$0xf]
        %v759 = vld [vmem:[%s720 + $0x8] sm:$0xf]
        %v760 = vld [vmem:[%s720 + $0xc] sm:$0xf]
        %v761 = vld [vmem:[%s720 + $0x10] sm:$0xf]
        %v762 = vld [vmem:[%s720 + $0x14] sm:$0xf]
        %v763 = vld [vmem:[%s720 + $0x18] sm:$0xf]
        %v764 = vld [vmem:[%s720 + $0x1c] sm:$0xf]
        %v765 = vld [vmem:[%s720 + $0x20] sm:$0xf]
        %v766 = vld [vmem:[%s720 + $0x24] sm:$0xf]
        %v767 = vld [vmem:[%s720 + $0x28] sm:$0xf]
        %v768 = vld [vmem:[%s720 + $0x2c] sm:$0xf]
        %v769 = vld [vmem:[%s720 + $0x30] sm:$0xf]
        %v770 = vld [vmem:[%s720 + $0x34] sm:$0xf]
        %v771 = vld [vmem:[%s720 + $0x38] sm:$0xf]
        %v772 = vld [vmem:[%s720 + $0x3c] sm:$0xf]
        %v773 = vld [vmem:[%s720 + $0x40] sm:$0xf]
        %v774 = vld [vmem:[%s720 + $0x44] sm:$0xf]
        %v775 = vld [vmem:[%s720 + $0x48] sm:$0xf]
        %v776 = vld [vmem:[%s720 + $0x4c] sm:$0xf]
        %v777 = vld [vmem:[%s720 + $0x50] sm:$0xf]
        %v778 = vld [vmem:[%s720 + $0x54] sm:$0xf]
        %v779 = vld [vmem:[%s720 + $0x58] sm:$0xf]
        %v780 = vld [vmem:[%s720 + $0x5c] sm:$0xf]
        %v781 = vld [vmem:[%s720 + $0x60] sm:$0xf]
        %v782 = vld [vmem:[%s720 + $0x64] sm:$0xf]
        %v783 = vld [vmem:[%s720 + $0x68] sm:$0xf]
        %v784 = vld [vmem:[%s720 + $0x6c] sm:$0xf]
        %v785 = vld [vmem:[%s720 + $0x70] sm:$0xf]
        %v786 = vld [vmem:[%s720 + $0x74] sm:$0xf]
        %v787 = vld [vmem:[%s720 + $0x78] sm:$0xf]
        %v788 = vld [vmem:[%s720 + $0x7c] sm:$0xf]
        %v821 = vunpack.c.l.b16 %v757
        %v822 = vunpack.c.l.b16 %v758
        %v823 = vunpack.c.l.b16 %v759
        %v824 = vunpack.c.l.b16 %v760
        %v825 = vunpack.c.l.b16 %v761
        %v826 = vunpack.c.l.b16 %v762
        %v827 = vunpack.c.l.b16 %v763
        %v828 = vunpack.c.l.b16 %v764
        %v829 = vunpack.c.l.b16 %v765
        %v830 = vunpack.c.l.b16 %v766
        %v831 = vunpack.c.l.b16 %v767
        %v832 = vunpack.c.l.b16 %v768
        %v833 = vunpack.c.l.b16 %v769
        %v834 = vunpack.c.l.b16 %v770
        %v835 = vunpack.c.l.b16 %v771
        %v836 = vunpack.c.l.b16 %v772
        %v837 = vunpack.c.l.b16 %v773
        %v838 = vunpack.c.l.b16 %v774
        %v839 = vunpack.c.l.b16 %v775
        %v840 = vunpack.c.l.b16 %v776
        %v841 = vunpack.c.l.b16 %v777
        %v842 = vunpack.c.l.b16 %v778
        %v843 = vunpack.c.l.b16 %v779
        %v844 = vunpack.c.l.b16 %v780
        %v845 = vunpack.c.l.b16 %v781
        %v846 = vunpack.c.l.b16 %v782
        %v847 = vunpack.c.l.b16 %v783
        %v848 = vunpack.c.l.b16 %v784
        %v849 = vunpack.c.l.b16 %v785
        %v850 = vunpack.c.l.b16 %v786
        %v851 = vunpack.c.l.b16 %v787
        %v852 = vunpack.c.l.b16 %v788
        %v853 = vpack.c.b16 %v822, %v821
        %v854 = vpack.c.b16 %v824, %v823
        %v855 = vpack.c.b16 %v826, %v825
        %v856 = vpack.c.b16 %v828, %v827
        %v857 = vpack.c.b16 %v830, %v829
        %v858 = vpack.c.b16 %v832, %v831
        %v859 = vpack.c.b16 %v834, %v833
        %v860 = vpack.c.b16 %v836, %v835
        %v861 = vpack.c.b16 %v838, %v837
        %v862 = vpack.c.b16 %v840, %v839
        %v863 = vpack.c.b16 %v842, %v841
        %v864 = vpack.c.b16 %v844, %v843
        %v865 = vpack.c.b16 %v846, %v845
        %v866 = vpack.c.b16 %v848, %v847
        %v867 = vpack.c.b16 %v850, %v849
        %v868 = vpack.c.b16 %v852, %v851
        %v873 = vunpack.c.l.b16 %v751
        %v874 = vunpack.c.l.b16 %v752
        %v875 = vunpack.c.l.b16 %v753
        %v876 = vunpack.c.l.b16 %v754
        %v877 = vpack.c.b16 %v874, %v873
        %v878 = vpack.c.b16 %v876, %v875
        %vm880 = vcmask 203776
        %v882 = vsel %vm880, %v853, 0
        %v885 = vsel %vm880, %v854, 0
        %v888 = vsel %vm880, %v855, 0
        %v891 = vsel %vm880, %v856, 0
        %v894 = vsel %vm880, %v857, 0
        %v897 = vsel %vm880, %v858, 0
        %v900 = vsel %vm880, %v859, 0
        %v903 = vsel %vm880, %v860, 0
        %v906 = vsel %vm880, %v861, 0
        %v909 = vsel %vm880, %v862, 0
        %v912 = vsel %vm880, %v863, 0
        %v915 = vsel %vm880, %v864, 0
        %v918 = vsel %vm880, %v865, 0
        %v921 = vsel %vm880, %v866, 0
        %v924 = vsel %vm880, %v867, 0
        %v927 = vsel %vm880, %v868, 0
        %vm929 = vcmask 1043456
        %vm930 = vcmask 1044480
        %v931 = vsel %vm929, 4294967295, 65535
        %v932 = vsel %vm930, %v931, 0
        %v934 = vand.u32 %v878, %v932
        %936 = vmatprep.subr.bf16.mxu0 0
        %937 = vmatpush1.bf16.msra.mxu0 %v877
        %938 = vmatprep.subr.bf16.mxu0 0
        %939 = vmatpush1.bf16.msra.mxu0 %v934
        %940 = vmatprep.subr.bf16.mxu0 0
        %941 = vmatpush1.bf16.msra.mxu0 0
        %942 = vmatprep.subr.bf16.mxu0 0
        %943 = vmatpush1.bf16.msra.mxu0 0
        %944 = vmatprep.subr.bf16.mxu0 0
        %945 = vmatpush1.bf16.msra.mxu0 0
        %946 = vmatprep.subr.bf16.mxu0 0
        %947 = vmatpush1.bf16.msra.mxu0 0
        %948 = vmatprep.subr.bf16.mxu0 0
        %949 = vmatpush1.bf16.msra.mxu0 0
        %950 = vmatprep.subr.bf16.mxu0 0
        %951 = vmatpush1.bf16.msra.mxu0 0
        %952 = vmatprep.subr.bf16.mxu0 0
        %953 = vmatpush1.bf16.msra.mxu0 0
        %954 = vmatprep.subr.bf16.mxu0 0
        %955 = vmatpush1.bf16.msra.mxu0 0
        %956 = vmatprep.subr.bf16.mxu0 0
        %957 = vmatpush1.bf16.msra.mxu0 0
        %958 = vmatprep.subr.bf16.mxu0 0
        %959 = vmatpush1.bf16.msra.mxu0 0
        %960 = vmatprep.subr.bf16.mxu0 0
        %961 = vmatpush1.bf16.msra.mxu0 0
        %962 = vmatprep.subr.bf16.mxu0 0
        %963 = vmatpush1.bf16.msra.mxu0 0
        %964 = vmatprep.subr.bf16.mxu0 0
        %965 = vmatpush1.bf16.msra.mxu0 0
        %966 = vmatprep.subr.bf16.mxu0 0
        %967 = vmatpush1.bf16.msra.mxu0 0
        %968 = vmatprep.mubr.bf16.mxu0 0
        %969 = vmatmul.mubr.bf16.gmra.mrb[0].mxu0 %v882
        %v970 = vpop.f32.mrb[0].mxu0
        %v971 = vadd.f32 0.0, %v970
        %v972 = vpop.f32.mrb[0].mxu0
        %v973 = vpop.f32.mrb[0].mxu0
        %v974 = vadd.f32 0.0, %v973
        %v975 = vpop.f32.mrb[0].mxu0
        %976 = vmatprep.mubr.bf16.mxu0 0
        %977 = vmatmul.mubr.bf16.gmra.mrb[0].mxu0 %v885
        %v978 = vpop.f32.mrb[0].mxu0
        %v979 = vadd.f32 0.0, %v978
        %v980 = vpop.f32.mrb[0].mxu0
        %v981 = vpop.f32.mrb[0].mxu0
        %v982 = vadd.f32 0.0, %v981
        %v983 = vpop.f32.mrb[0].mxu0
        %984 = vmatprep.mubr.bf16.mxu0 0
        %985 = vmatmul.mubr.bf16.gmra.mrb[0].mxu0 %v888
        %v986 = vpop.f32.mrb[0].mxu0
        %v987 = vadd.f32 0.0, %v986
        %v988 = vpop.f32.mrb[0].mxu0
        %v989 = vpop.f32.mrb[0].mxu0
        %v990 = vadd.f32 0.0, %v989
        %v991 = vpop.f32.mrb[0].mxu0
        %992 = vmatprep.mubr.bf16.mxu0 0
        %993 = vmatmul.mubr.bf16.gmra.mrb[0].mxu0 %v891
        %v994 = vpop.f32.mrb[0].mxu0
        %v995 = vadd.f32 0.0, %v994
        %v996 = vpop.f32.mrb[0].mxu0
        %v997 = vpop.f32.mrb[0].mxu0
        %v998 = vadd.f32 0.0, %v997
        %v999 = vpop.f32.mrb[0].mxu0
        %1000 = vmatprep.mubr.bf16.mxu0 0
        %1001 = vmatmul.mubr.bf16.gmra.mrb[0].mxu0 %v894
        %v1002 = vpop.f32.mrb[0].mxu0
        %v1003 = vadd.f32 0.0, %v1002
        %v1004 = vpop.f32.mrb[0].mxu0
        %v1005 = vpop.f32.mrb[0].mxu0
        %v1006 = vadd.f32 0.0, %v1005
        %v1007 = vpop.f32.mrb[0].mxu0
        %1008 = vmatprep.mubr.bf16.mxu0 0
        %1009 = vmatmul.mubr.bf16.gmra.mrb[0].mxu0 %v897
        %v1010 = vpop.f32.mrb[0].mxu0
        %v1011 = vadd.f32 0.0, %v1010
        %v1012 = vpop.f32.mrb[0].mxu0
        %v1013 = vpop.f32.mrb[0].mxu0
        %v1014 = vadd.f32 0.0, %v1013
        %v1015 = vpop.f32.mrb[0].mxu0
        %1016 = vmatprep.mubr.bf16.mxu0 0
        %1017 = vmatmul.mubr.bf16.gmra.mrb[0].mxu0 %v900
        %v1018 = vpop.f32.mrb[0].mxu0
        %v1019 = vadd.f32 0.0, %v1018
        %v1020 = vpop.f32.mrb[0].mxu0
        %v1021 = vpop.f32.mrb[0].mxu0
        %v1022 = vadd.f32 0.0, %v1021
        %v1023 = vpop.f32.mrb[0].mxu0
        %1024 = vmatprep.mubr.bf16.mxu0 0
        %1025 = vmatmul.mubr.bf16.gmra.mrb[0].mxu0 %v903
        %v1026 = vpop.f32.mrb[0].mxu0
        %v1027 = vadd.f32 0.0, %v1026
        %v1028 = vpop.f32.mrb[0].mxu0
        %v1029 = vpop.f32.mrb[0].mxu0
        %v1030 = vadd.f32 0.0, %v1029
        %v1031 = vpop.f32.mrb[0].mxu0
        %1032 = vmatprep.mubr.bf16.mxu0 0
        %1033 = vmatmul.mubr.bf16.gmra.mrb[0].mxu0 %v906
        %v1034 = vpop.f32.mrb[0].mxu0
        %v1035 = vadd.f32 0.0, %v1034
        %v1036 = vpop.f32.mrb[0].mxu0
        %v1037 = vpop.f32.mrb[0].mxu0
        %v1038 = vadd.f32 0.0, %v1037
        %v1039 = vpop.f32.mrb[0].mxu0
        %1040 = vmatprep.mubr.bf16.mxu0 0
        %1041 = vmatmul.mubr.bf16.gmra.mrb[0].mxu0 %v909
        %v1042 = vpop.f32.mrb[0].mxu0
        %v1043 = vadd.f32 0.0, %v1042
        %v1044 = vpop.f32.mrb[0].mxu0
        %v1045 = vpop.f32.mrb[0].mxu0
        %v1046 = vadd.f32 0.0, %v1045
        %v1047 = vpop.f32.mrb[0].mxu0
        %1048 = vmatprep.mubr.bf16.mxu0 0
        %1049 = vmatmul.mubr.bf16.gmra.mrb[0].mxu0 %v912
        %v1050 = vpop.f32.mrb[0].mxu0
        %v1051 = vadd.f32 0.0, %v1050
        %v1052 = vpop.f32.mrb[0].mxu0
        %v1053 = vpop.f32.mrb[0].mxu0
        %v1054 = vadd.f32 0.0, %v1053
        %v1055 = vpop.f32.mrb[0].mxu0
        %1056 = vmatprep.mubr.bf16.mxu0 0
        %1057 = vmatmul.mubr.bf16.gmra.mrb[0].mxu0 %v915
        %v1058 = vpop.f32.mrb[0].mxu0
        %v1059 = vadd.f32 0.0, %v1058
        %v1060 = vpop.f32.mrb[0].mxu0
        %v1061 = vpop.f32.mrb[0].mxu0
        %v1062 = vadd.f32 0.0, %v1061
        %v1063 = vpop.f32.mrb[0].mxu0
        %1064 = vmatprep.mubr.bf16.mxu0 0
        %1065 = vmatmul.mubr.bf16.gmra.mrb[0].mxu0 %v918
        %v1066 = vpop.f32.mrb[0].mxu0
        %v1067 = vadd.f32 0.0, %v1066
        %v1068 = vpop.f32.mrb[0].mxu0
        %v1069 = vpop.f32.mrb[0].mxu0
        %v1070 = vadd.f32 0.0, %v1069
        %v1071 = vpop.f32.mrb[0].mxu0
        %1072 = vmatprep.mubr.bf16.mxu0 0
        %1073 = vmatmul.mubr.bf16.gmra.mrb[0].mxu0 %v921
        %v1074 = vpop.f32.mrb[0].mxu0
        %v1075 = vadd.f32 0.0, %v1074
        %v1076 = vpop.f32.mrb[0].mxu0
        %v1077 = vpop.f32.mrb[0].mxu0
        %v1078 = vadd.f32 0.0, %v1077
        %v1079 = vpop.f32.mrb[0].mxu0
        %1080 = vmatprep.mubr.bf16.mxu0 0
        %1081 = vmatmul.mubr.bf16.gmra.mrb[0].mxu0 %v924
        %v1082 = vpop.f32.mrb[0].mxu0
        %v1083 = vadd.f32 0.0, %v1082
        %v1084 = vpop.f32.mrb[0].mxu0
        %v1085 = vpop.f32.mrb[0].mxu0
        %v1086 = vadd.f32 0.0, %v1085
        %v1087 = vpop.f32.mrb[0].mxu0
        %1088 = vmatprep.mubr.bf16.mxu0 0
        %1089 = vmatmul.mubr.bf16.gmra.mrb[0].mxu0 %v927
        %v1090 = vpop.f32.mrb[0].mxu0
        %v1091 = vadd.f32 0.0, %v1090
        %v1092 = vpop.f32.mrb[0].mxu0
        %v1093 = vpop.f32.mrb[0].mxu0
        %v1094 = vadd.f32 0.0, %v1093
        %v1095 = vpop.f32.mrb[0].mxu0
        %1096 = vdwg.mxu0
        %v1098 = vlaneseq
        %v1099 = vshrl.u32 %v1098, 7
        %v1100 = vsub.s32 0, %v1099
        %v1101 = vrot.slane %v755, %v1100
        %v1103 = vmul.f32 %v971, %v1101
        %v1104 = vmul.f32 %v974, %v1101
        %v1105 = vmul.f32 %v979, %v1101
        %v1106 = vmul.f32 %v982, %v1101
        %v1107 = vmul.f32 %v987, %v1101
        %v1108 = vmul.f32 %v990, %v1101
        %v1109 = vmul.f32 %v995, %v1101
        %v1110 = vmul.f32 %v998, %v1101
        %v1111 = vmul.f32 %v1003, %v1101
        %v1112 = vmul.f32 %v1006, %v1101
        %v1113 = vmul.f32 %v1011, %v1101
        %v1114 = vmul.f32 %v1014, %v1101
        %v1115 = vmul.f32 %v1019, %v1101
        %v1116 = vmul.f32 %v1022, %v1101
        %v1117 = vmul.f32 %v1027, %v1101
        %v1118 = vmul.f32 %v1030, %v1101
        %v1119 = vmul.f32 %v1035, %v1101
        %v1120 = vmul.f32 %v1038, %v1101
        %v1121 = vmul.f32 %v1043, %v1101
        %v1122 = vmul.f32 %v1046, %v1101
        %v1123 = vmul.f32 %v1051, %v1101
        %v1124 = vmul.f32 %v1054, %v1101
        %v1125 = vmul.f32 %v1059, %v1101
        %v1126 = vmul.f32 %v1062, %v1101
        %v1127 = vmul.f32 %v1067, %v1101
        %v1128 = vmul.f32 %v1070, %v1101
        %v1129 = vmul.f32 %v1075, %v1101
        %v1130 = vmul.f32 %v1078, %v1101
        %v1131 = vmul.f32 %v1083, %v1101
        %v1132 = vmul.f32 %v1086, %v1101
        %v1133 = vmul.f32 %v1091, %v1101
        %v1134 = vmul.f32 %v1094, %v1101
        %v1136 = vlaneseq
        %v1137 = vshrl.u32 %v1136, 7
        %v1138 = vsub.s32 0, %v1137
        %v1139 = vrot.slane %v756, %v1138
        %v1141 = vadd.f32 %v1103, %v1139
        %v1142 = vadd.f32 %v1104, %v1139
        %v1143 = vadd.f32 %v1105, %v1139
        %v1144 = vadd.f32 %v1106, %v1139
        %v1145 = vadd.f32 %v1107, %v1139
        %v1146 = vadd.f32 %v1108, %v1139
        %v1147 = vadd.f32 %v1109, %v1139
        %v1148 = vadd.f32 %v1110, %v1139
        %v1149 = vadd.f32 %v1111, %v1139
        %v1150 = vadd.f32 %v1112, %v1139
        %v1151 = vadd.f32 %v1113, %v1139
        %v1152 = vadd.f32 %v1114, %v1139
        %v1153 = vadd.f32 %v1115, %v1139
        %v1154 = vadd.f32 %v1116, %v1139
        %v1155 = vadd.f32 %v1117, %v1139
        %v1156 = vadd.f32 %v1118, %v1139
        %v1157 = vadd.f32 %v1119, %v1139
        %v1158 = vadd.f32 %v1120, %v1139
        %v1159 = vadd.f32 %v1121, %v1139
        %v1160 = vadd.f32 %v1122, %v1139
        %v1161 = vadd.f32 %v1123, %v1139
        %v1162 = vadd.f32 %v1124, %v1139
        %v1163 = vadd.f32 %v1125, %v1139
        %v1164 = vadd.f32 %v1126, %v1139
        %v1165 = vadd.f32 %v1127, %v1139
        %v1166 = vadd.f32 %v1128, %v1139
        %v1167 = vadd.f32 %v1129, %v1139
        %v1168 = vadd.f32 %v1130, %v1139
        %v1169 = vadd.f32 %v1131, %v1139
        %v1170 = vadd.f32 %v1132, %v1139
        %v1171 = vadd.f32 %v1133, %v1139
        %v1172 = vadd.f32 %v1134, %v1139
        %v1173 = vmax.f32 %v1141, 0.0
        %v1174 = vmax.f32 %v1142, 0.0
        %v1175 = vmax.f32 %v1143, 0.0
        %v1176 = vmax.f32 %v1144, 0.0
        %v1177 = vmax.f32 %v1145, 0.0
        %v1178 = vmax.f32 %v1146, 0.0
        %v1179 = vmax.f32 %v1147, 0.0
        %v1180 = vmax.f32 %v1148, 0.0
        %v1181 = vmax.f32 %v1149, 0.0
        %v1182 = vmax.f32 %v1150, 0.0
        %v1183 = vmax.f32 %v1151, 0.0
        %v1184 = vmax.f32 %v1152, 0.0
        %v1185 = vmax.f32 %v1153, 0.0
        %v1186 = vmax.f32 %v1154, 0.0
        %v1187 = vmax.f32 %v1155, 0.0
        %v1188 = vmax.f32 %v1156, 0.0
        %v1189 = vmax.f32 %v1157, 0.0
        %v1190 = vmax.f32 %v1158, 0.0
        %v1191 = vmax.f32 %v1159, 0.0
        %v1192 = vmax.f32 %v1160, 0.0
        %v1193 = vmax.f32 %v1161, 0.0
        %v1194 = vmax.f32 %v1162, 0.0
        %v1195 = vmax.f32 %v1163, 0.0
        %v1196 = vmax.f32 %v1164, 0.0
        %v1197 = vmax.f32 %v1165, 0.0
        %v1198 = vmax.f32 %v1166, 0.0
        %v1199 = vmax.f32 %v1167, 0.0
        %v1200 = vmax.f32 %v1168, 0.0
        %v1201 = vmax.f32 %v1169, 0.0
        %v1202 = vmax.f32 %v1170, 0.0
        %v1203 = vmax.f32 %v1171, 0.0
        %v1204 = vmax.f32 %v1172, 0.0
        %v1205 = vadd.f32 %v1173, 0.0
        %v1206 = vadd.f32 %v1174, 0.0
        %v1207 = vadd.f32 %v1175, 0.0
        %v1208 = vadd.f32 %v1176, 0.0
        %v1209 = vadd.f32 %v1177, 0.0
        %v1210 = vadd.f32 %v1178, 0.0
        %v1211 = vadd.f32 %v1179, 0.0
        %v1212 = vadd.f32 %v1180, 0.0
        %v1213 = vadd.f32 %v1181, 0.0
        %v1214 = vadd.f32 %v1182, 0.0
        %v1215 = vadd.f32 %v1183, 0.0
        %v1216 = vadd.f32 %v1184, 0.0
        %v1217 = vadd.f32 %v1185, 0.0
        %v1218 = vadd.f32 %v1186, 0.0
        %v1219 = vadd.f32 %v1187, 0.0
        %v1220 = vadd.f32 %v1188, 0.0
        %v1221 = vadd.f32 %v1189, 0.0
        %v1222 = vadd.f32 %v1190, 0.0
        %v1223 = vadd.f32 %v1191, 0.0
        %v1224 = vadd.f32 %v1192, 0.0
        %v1225 = vadd.f32 %v1193, 0.0
        %v1226 = vadd.f32 %v1194, 0.0
        %v1227 = vadd.f32 %v1195, 0.0
        %v1228 = vadd.f32 %v1196, 0.0
        %v1229 = vadd.f32 %v1197, 0.0
        %v1230 = vadd.f32 %v1198, 0.0
        %v1231 = vadd.f32 %v1199, 0.0
        %v1232 = vadd.f32 %v1200, 0.0
        %v1233 = vadd.f32 %v1201, 0.0
        %v1234 = vadd.f32 %v1202, 0.0
        %v1235 = vadd.f32 %v1203, 0.0
        %v1236 = vadd.f32 %v1204, 0.0
        %s1237 = scalar_lea.vmem %s720, 128 [#allocation2]
        %v1238 = vld [vmem:[%s1237] sm:$0xf]
        %v1239 = vld [vmem:[%s1237 + $0x4] sm:$0xf]
        %v1240 = vld [vmem:[%s1237 + $0x8] sm:$0xf]
        %v1241 = vld [vmem:[%s1237 + $0xc] sm:$0xf]
        %v1242 = vld [vmem:[%s1237 + $0x10] sm:$0xf]
        %v1243 = vld [vmem:[%s1237 + $0x14] sm:$0xf]
        %v1244 = vld [vmem:[%s1237 + $0x18] sm:$0xf]
        %v1245 = vld [vmem:[%s1237 + $0x1c] sm:$0xf]
        %v1246 = vld [vmem:[%s1237 + $0x20] sm:$0xf]
        %v1247 = vld [vmem:[%s1237 + $0x24] sm:$0xf]
        %v1248 = vld [vmem:[%s1237 + $0x28] sm:$0xf]
        %v1249 = vld [vmem:[%s1237 + $0x2c] sm:$0xf]
        %v1250 = vld [vmem:[%s1237 + $0x30] sm:$0xf]
        %v1251 = vld [vmem:[%s1237 + $0x34] sm:$0xf]
        %v1252 = vld [vmem:[%s1237 + $0x38] sm:$0xf]
        %v1253 = vld [vmem:[%s1237 + $0x3c] sm:$0xf]
        %v1254 = vld [vmem:[%s1237 + $0x40] sm:$0xf]
        %v1255 = vld [vmem:[%s1237 + $0x44] sm:$0xf]
        %v1256 = vld [vmem:[%s1237 + $0x48] sm:$0xf]
        %v1257 = vld [vmem:[%s1237 + $0x4c] sm:$0xf]
        %v1258 = vld [vmem:[%s1237 + $0x50] sm:$0xf]
        %v1259 = vld [vmem:[%s1237 + $0x54] sm:$0xf]
        %v1260 = vld [vmem:[%s1237 + $0x58] sm:$0xf]
        %v1261 = vld [vmem:[%s1237 + $0x5c] sm:$0xf]
        %v1262 = vld [vmem:[%s1237 + $0x60] sm:$0xf]
        %v1263 = vld [vmem:[%s1237 + $0x64] sm:$0xf]
        %v1264 = vld [vmem:[%s1237 + $0x68] sm:$0xf]
        %v1265 = vld [vmem:[%s1237 + $0x6c] sm:$0xf]
        %v1266 = vld [vmem:[%s1237 + $0x70] sm:$0xf]
        %v1267 = vld [vmem:[%s1237 + $0x74] sm:$0xf]
        %v1268 = vld [vmem:[%s1237 + $0x78] sm:$0xf]
        %v1269 = vld [vmem:[%s1237 + $0x7c] sm:$0xf]
        %v1302 = vunpack.c.l.b16 %v1238
        %v1303 = vunpack.c.l.b16 %v1239
        %v1304 = vunpack.c.l.b16 %v1240
        %v1305 = vunpack.c.l.b16 %v1241
        %v1306 = vunpack.c.l.b16 %v1242
        %v1307 = vunpack.c.l.b16 %v1243
        %v1308 = vunpack.c.l.b16 %v1244
        %v1309 = vunpack.c.l.b16 %v1245
        %v1310 = vunpack.c.l.b16 %v1246
        %v1311 = vunpack.c.l.b16 %v1247
        %v1312 = vunpack.c.l.b16 %v1248
        %v1313 = vunpack.c.l.b16 %v1249
        %v1314 = vunpack.c.l.b16 %v1250
        %v1315 = vunpack.c.l.b16 %v1251
        %v1316 = vunpack.c.l.b16 %v1252
        %v1317 = vunpack.c.l.b16 %v1253
        %v1318 = vunpack.c.l.b16 %v1254
        %v1319 = vunpack.c.l.b16 %v1255
        %v1320 = vunpack.c.l.b16 %v1256
        %v1321 = vunpack.c.l.b16 %v1257
        %v1322 = vunpack.c.l.b16 %v1258
        %v1323 = vunpack.c.l.b16 %v1259
        %v1324 = vunpack.c.l.b16 %v1260
        %v1325 = vunpack.c.l.b16 %v1261
        %v1326 = vunpack.c.l.b16 %v1262
        %v1327 = vunpack.c.l.b16 %v1263
        %v1328 = vunpack.c.l.b16 %v1264
        %v1329 = vunpack.c.l.b16 %v1265
        %v1330 = vunpack.c.l.b16 %v1266
        %v1331 = vunpack.c.l.b16 %v1267
        %v1332 = vunpack.c.l.b16 %v1268
        %v1333 = vunpack.c.l.b16 %v1269
        %v1334 = vpack.c.b16 %v1303, %v1302
        %v1335 = vpack.c.b16 %v1305, %v1304
        %v1336 = vpack.c.b16 %v1307, %v1306
        %v1337 = vpack.c.b16 %v1309, %v1308
        %v1338 = vpack.c.b16 %v1311, %v1310
        %v1339 = vpack.c.b16 %v1313, %v1312
        %v1340 = vpack.c.b16 %v1315, %v1314
        %v1341 = vpack.c.b16 %v1317, %v1316
        %v1342 = vpack.c.b16 %v1319, %v1318
        %v1343 = vpack.c.b16 %v1321, %v1320
        %v1344 = vpack.c.b16 %v1323, %v1322
        %v1345 = vpack.c.b16 %v1325, %v1324
        %v1346 = vpack.c.b16 %v1327, %v1326
        %v1347 = vpack.c.b16 %v1329, %v1328
        %v1348 = vpack.c.b16 %v1331, %v1330
        %v1349 = vpack.c.b16 %v1333, %v1332
        %v1351 = vsel %vm880, %v1334, 0
        %v1354 = vsel %vm880, %v1335, 0
        %v1357 = vsel %vm880, %v1336, 0
        %v1360 = vsel %vm880, %v1337, 0
        %v1363 = vsel %vm880, %v1338, 0
        %v1366 = vsel %vm880, %v1339, 0
        %v1369 = vsel %vm880, %v1340, 0
        %v1372 = vsel %vm880, %v1341, 0
        %v1375 = vsel %vm880, %v1342, 0
        %v1378 = vsel %vm880, %v1343, 0
        %v1381 = vsel %vm880, %v1344, 0
        %v1384 = vsel %vm880, %v1345, 0
        %v1387 = vsel %vm880, %v1346, 0
        %v1390 = vsel %vm880, %v1347, 0
        %v1393 = vsel %vm880, %v1348, 0
        %v1396 = vsel %vm880, %v1349, 0
        %1398 = vmatprep.subr.bf16.mxu0 0
        %1399 = vmatpush1.bf16.msra.mxu0 %v877
        %1400 = vmatprep.subr.bf16.mxu0 0
        %1401 = vmatpush1.bf16.msra.mxu0 %v934
        %1402 = vmatprep.subr.bf16.mxu0 0
        %1403 = vmatpush1.bf16.msra.mxu0 0
        %1404 = vmatprep.subr.bf16.mxu0 0
        %1405 = vmatpush1.bf16.msra.mxu0 0
        %1406 = vmatprep.subr.bf16.mxu0 0
        %1407 = vmatpush1.bf16.msra.mxu0 0
        %1408 = vmatprep.subr.bf16.mxu0 0
        %1409 = vmatpush1.bf16.msra.mxu0 0
        %1410 = vmatprep.subr.bf16.mxu0 0
        %1411 = vmatpush1.bf16.msra.mxu0 0
        %1412 = vmatprep.subr.bf16.mxu0 0
        %1413 = vmatpush1.bf16.msra.mxu0 0
        %1414 = vmatprep.subr.bf16.mxu0 0
        %1415 = vmatpush1.bf16.msra.mxu0 0
        %1416 = vmatprep.subr.bf16.mxu0 0
        %1417 = vmatpush1.bf16.msra.mxu0 0
        %1418 = vmatprep.subr.bf16.mxu0 0
        %1419 = vmatpush1.bf16.msra.mxu0 0
        %1420 = vmatprep.subr.bf16.mxu0 0
        %1421 = vmatpush1.bf16.msra.mxu0 0
        %1422 = vmatprep.subr.bf16.mxu0 0
        %1423 = vmatpush1.bf16.msra.mxu0 0
        %1424 = vmatprep.subr.bf16.mxu0 0
        %1425 = vmatpush1.bf16.msra.mxu0 0
        %1426 = vmatprep.subr.bf16.mxu0 0
        %1427 = vmatpush1.bf16.msra.mxu0 0
        %1428 = vmatprep.subr.bf16.mxu0 0
        %1429 = vmatpush1.bf16.msra.mxu0 0
        %1430 = vmatprep.mubr.bf16.mxu0 0
        %1431 = vmatmul.mubr.bf16.gmra.mrb[0].mxu0 %v1351
        %v1432 = vpop.f32.mrb[0].mxu0
        %v1433 = vadd.f32 0.0, %v1432
        %v1434 = vpop.f32.mrb[0].mxu0
        %v1435 = vpop.f32.mrb[0].mxu0
        %v1436 = vadd.f32 0.0, %v1435
        %v1437 = vpop.f32.mrb[0].mxu0
        %1438 = vmatprep.mubr.bf16.mxu0 0
        %1439 = vmatmul.mubr.bf16.gmra.mrb[0].mxu0 %v1354
        %v1440 = vpop.f32.mrb[0].mxu0
        %v1441 = vadd.f32 0.0, %v1440
        %v1442 = vpop.f32.mrb[0].mxu0
        %v1443 = vpop.f32.mrb[0].mxu0
        %v1444 = vadd.f32 0.0, %v1443
        %v1445 = vpop.f32.mrb[0].mxu0
        %1446 = vmatprep.mubr.bf16.mxu0 0
        %1447 = vmatmul.mubr.bf16.gmra.mrb[0].mxu0 %v1357
        %v1448 = vpop.f32.mrb[0].mxu0
        %v1449 = vadd.f32 0.0, %v1448
        %v1450 = vpop.f32.mrb[0].mxu0
        %v1451 = vpop.f32.mrb[0].mxu0
        %v1452 = vadd.f32 0.0, %v1451
        %v1453 = vpop.f32.mrb[0].mxu0
        %1454 = vmatprep.mubr.bf16.mxu0 0
        %1455 = vmatmul.mubr.bf16.gmra.mrb[0].mxu0 %v1360
        %v1456 = vpop.f32.mrb[0].mxu0
        %v1457 = vadd.f32 0.0, %v1456
        %v1458 = vpop.f32.mrb[0].mxu0
        %v1459 = vpop.f32.mrb[0].mxu0
        %v1460 = vadd.f32 0.0, %v1459
        %v1461 = vpop.f32.mrb[0].mxu0
        %1462 = vmatprep.mubr.bf16.mxu0 0
        %1463 = vmatmul.mubr.bf16.gmra.mrb[0].mxu0 %v1363
        %v1464 = vpop.f32.mrb[0].mxu0
        %v1465 = vadd.f32 0.0, %v1464
        %v1466 = vpop.f32.mrb[0].mxu0
        %v1467 = vpop.f32.mrb[0].mxu0
        %v1468 = vadd.f32 0.0, %v1467
        %v1469 = vpop.f32.mrb[0].mxu0
        %1470 = vmatprep.mubr.bf16.mxu0 0
        %1471 = vmatmul.mubr.bf16.gmra.mrb[0].mxu0 %v1366
        %v1472 = vpop.f32.mrb[0].mxu0
        %v1473 = vadd.f32 0.0, %v1472
        %v1474 = vpop.f32.mrb[0].mxu0
        %v1475 = vpop.f32.mrb[0].mxu0
        %v1476 = vadd.f32 0.0, %v1475
        %v1477 = vpop.f32.mrb[0].mxu0
        %1478 = vmatprep.mubr.bf16.mxu0 0
        %1479 = vmatmul.mubr.bf16.gmra.mrb[0].mxu0 %v1369
        %v1480 = vpop.f32.mrb[0].mxu0
        %v1481 = vadd.f32 0.0, %v1480
        %v1482 = vpop.f32.mrb[0].mxu0
        %v1483 = vpop.f32.mrb[0].mxu0
        %v1484 = vadd.f32 0.0, %v1483
        %v1485 = vpop.f32.mrb[0].mxu0
        %1486 = vmatprep.mubr.bf16.mxu0 0
        %1487 = vmatmul.mubr.bf16.gmra.mrb[0].mxu0 %v1372
        %v1488 = vpop.f32.mrb[0].mxu0
        %v1489 = vadd.f32 0.0, %v1488
        %v1490 = vpop.f32.mrb[0].mxu0
        %v1491 = vpop.f32.mrb[0].mxu0
        %v1492 = vadd.f32 0.0, %v1491
        %v1493 = vpop.f32.mrb[0].mxu0
        %1494 = vmatprep.mubr.bf16.mxu0 0
        %1495 = vmatmul.mubr.bf16.gmra.mrb[0].mxu0 %v1375
        %v1496 = vpop.f32.mrb[0].mxu0
        %v1497 = vadd.f32 0.0, %v1496
        %v1498 = vpop.f32.mrb[0].mxu0
        %v1499 = vpop.f32.mrb[0].mxu0
        %v1500 = vadd.f32 0.0, %v1499
        %v1501 = vpop.f32.mrb[0].mxu0
        %1502 = vmatprep.mubr.bf16.mxu0 0
        %1503 = vmatmul.mubr.bf16.gmra.mrb[0].mxu0 %v1378
        %v1504 = vpop.f32.mrb[0].mxu0
        %v1505 = vadd.f32 0.0, %v1504
        %v1506 = vpop.f32.mrb[0].mxu0
        %v1507 = vpop.f32.mrb[0].mxu0
        %v1508 = vadd.f32 0.0, %v1507
        %v1509 = vpop.f32.mrb[0].mxu0
        %1510 = vmatprep.mubr.bf16.mxu0 0
        %1511 = vmatmul.mubr.bf16.gmra.mrb[0].mxu0 %v1381
        %v1512 = vpop.f32.mrb[0].mxu0
        %v1513 = vadd.f32 0.0, %v1512
        %v1514 = vpop.f32.mrb[0].mxu0
        %v1515 = vpop.f32.mrb[0].mxu0
        %v1516 = vadd.f32 0.0, %v1515
        %v1517 = vpop.f32.mrb[0].mxu0
        %1518 = vmatprep.mubr.bf16.mxu0 0
        %1519 = vmatmul.mubr.bf16.gmra.mrb[0].mxu0 %v1384
        %v1520 = vpop.f32.mrb[0].mxu0
        %v1521 = vadd.f32 0.0, %v1520
        %v1522 = vpop.f32.mrb[0].mxu0
        %v1523 = vpop.f32.mrb[0].mxu0
        %v1524 = vadd.f32 0.0, %v1523
        %v1525 = vpop.f32.mrb[0].mxu0
        %1526 = vmatprep.mubr.bf16.mxu0 0
        %1527 = vmatmul.mubr.bf16.gmra.mrb[0].mxu0 %v1387
        %v1528 = vpop.f32.mrb[0].mxu0
        %v1529 = vadd.f32 0.0, %v1528
        %v1530 = vpop.f32.mrb[0].mxu0
        %v1531 = vpop.f32.mrb[0].mxu0
        %v1532 = vadd.f32 0.0, %v1531
        %v1533 = vpop.f32.mrb[0].mxu0
        %1534 = vmatprep.mubr.bf16.mxu0 0
        %1535 = vmatmul.mubr.bf16.gmra.mrb[0].mxu0 %v1390
        %v1536 = vpop.f32.mrb[0].mxu0
        %v1537 = vadd.f32 0.0, %v1536
        %v1538 = vpop.f32.mrb[0].mxu0
        %v1539 = vpop.f32.mrb[0].mxu0
        %v1540 = vadd.f32 0.0, %v1539
        %v1541 = vpop.f32.mrb[0].mxu0
        %1542 = vmatprep.mubr.bf16.mxu0 0
        %1543 = vmatmul.mubr.bf16.gmra.mrb[0].mxu0 %v1393
        %v1544 = vpop.f32.mrb[0].mxu0
        %v1545 = vadd.f32 0.0, %v1544
        %v1546 = vpop.f32.mrb[0].mxu0
        %v1547 = vpop.f32.mrb[0].mxu0
        %v1548 = vadd.f32 0.0, %v1547
        %v1549 = vpop.f32.mrb[0].mxu0
        %1550 = vmatprep.mubr.bf16.mxu0 0
        %1551 = vmatmul.mubr.bf16.gmra.mrb[0].mxu0 %v1396
        %v1552 = vpop.f32.mrb[0].mxu0
        %v1553 = vadd.f32 0.0, %v1552
        %v1554 = vpop.f32.mrb[0].mxu0
        %v1555 = vpop.f32.mrb[0].mxu0
        %v1556 = vadd.f32 0.0, %v1555
        %v1557 = vpop.f32.mrb[0].mxu0
        %1558 = vdwg.mxu0
        %v1559 = vmul.f32 %v1433, %v1101
        %v1560 = vmul.f32 %v1436, %v1101
        %v1561 = vmul.f32 %v1441, %v1101
        %v1562 = vmul.f32 %v1444, %v1101
        %v1563 = vmul.f32 %v1449, %v1101
        %v1564 = vmul.f32 %v1452, %v1101
        %v1565 = vmul.f32 %v1457, %v1101
        %v1566 = vmul.f32 %v1460, %v1101
        %v1567 = vmul.f32 %v1465, %v1101
        %v1568 = vmul.f32 %v1468, %v1101
        %v1569 = vmul.f32 %v1473, %v1101
        %v1570 = vmul.f32 %v1476, %v1101
        %v1571 = vmul.f32 %v1481, %v1101
        %v1572 = vmul.f32 %v1484, %v1101
        %v1573 = vmul.f32 %v1489, %v1101
        %v1574 = vmul.f32 %v1492, %v1101
        %v1575 = vmul.f32 %v1497, %v1101
        %v1576 = vmul.f32 %v1500, %v1101
        %v1577 = vmul.f32 %v1505, %v1101
        %v1578 = vmul.f32 %v1508, %v1101
        %v1579 = vmul.f32 %v1513, %v1101
        %v1580 = vmul.f32 %v1516, %v1101
        %v1581 = vmul.f32 %v1521, %v1101
        %v1582 = vmul.f32 %v1524, %v1101
        %v1583 = vmul.f32 %v1529, %v1101
        %v1584 = vmul.f32 %v1532, %v1101
        %v1585 = vmul.f32 %v1537, %v1101
        %v1586 = vmul.f32 %v1540, %v1101
        %v1587 = vmul.f32 %v1545, %v1101
        %v1588 = vmul.f32 %v1548, %v1101
        %v1589 = vmul.f32 %v1553, %v1101
        %v1590 = vmul.f32 %v1556, %v1101
        %v1591 = vadd.f32 %v1559, %v1139
        %v1592 = vadd.f32 %v1560, %v1139
        %v1593 = vadd.f32 %v1561, %v1139
        %v1594 = vadd.f32 %v1562, %v1139
        %v1595 = vadd.f32 %v1563, %v1139
        %v1596 = vadd.f32 %v1564, %v1139
        %v1597 = vadd.f32 %v1565, %v1139
        %v1598 = vadd.f32 %v1566, %v1139
        %v1599 = vadd.f32 %v1567, %v1139
        %v1600 = vadd.f32 %v1568, %v1139
        %v1601 = vadd.f32 %v1569, %v1139
        %v1602 = vadd.f32 %v1570, %v1139
        %v1603 = vadd.f32 %v1571, %v1139
        %v1604 = vadd.f32 %v1572, %v1139
        %v1605 = vadd.f32 %v1573, %v1139
        %v1606 = vadd.f32 %v1574, %v1139
        %v1607 = vadd.f32 %v1575, %v1139
        %v1608 = vadd.f32 %v1576, %v1139
        %v1609 = vadd.f32 %v1577, %v1139
        %v1610 = vadd.f32 %v1578, %v1139
        %v1611 = vadd.f32 %v1579, %v1139
        %v1612 = vadd.f32 %v1580, %v1139
        %v1613 = vadd.f32 %v1581, %v1139
        %v1614 = vadd.f32 %v1582, %v1139
        %v1615 = vadd.f32 %v1583, %v1139
        %v1616 = vadd.f32 %v1584, %v1139
        %v1617 = vadd.f32 %v1585, %v1139
        %v1618 = vadd.f32 %v1586, %v1139
        %v1619 = vadd.f32 %v1587, %v1139
        %v1620 = vadd.f32 %v1588, %v1139
        %v1621 = vadd.f32 %v1589, %v1139
        %v1622 = vadd.f32 %v1590, %v1139
        %v1623 = vmax.f32 %v1591, 0.0
        %v1624 = vmax.f32 %v1592, 0.0
        %v1625 = vmax.f32 %v1593, 0.0
        %v1626 = vmax.f32 %v1594, 0.0
        %v1627 = vmax.f32 %v1595, 0.0
        %v1628 = vmax.f32 %v1596, 0.0
        %v1629 = vmax.f32 %v1597, 0.0
        %v1630 = vmax.f32 %v1598, 0.0
        %v1631 = vmax.f32 %v1599, 0.0
        %v1632 = vmax.f32 %v1600, 0.0
        %v1633 = vmax.f32 %v1601, 0.0
        %v1634 = vmax.f32 %v1602, 0.0
        %v1635 = vmax.f32 %v1603, 0.0
        %v1636 = vmax.f32 %v1604, 0.0
        %v1637 = vmax.f32 %v1605, 0.0
        %v1638 = vmax.f32 %v1606, 0.0
        %v1639 = vmax.f32 %v1607, 0.0
        %v1640 = vmax.f32 %v1608, 0.0
        %v1641 = vmax.f32 %v1609, 0.0
        %v1642 = vmax.f32 %v1610, 0.0
        %v1643 = vmax.f32 %v1611, 0.0
        %v1644 = vmax.f32 %v1612, 0.0
        %v1645 = vmax.f32 %v1613, 0.0
        %v1646 = vmax.f32 %v1614, 0.0
        %v1647 = vmax.f32 %v1615, 0.0
        %v1648 = vmax.f32 %v1616, 0.0
        %v1649 = vmax.f32 %v1617, 0.0
        %v1650 = vmax.f32 %v1618, 0.0
        %v1651 = vmax.f32 %v1619, 0.0
        %v1652 = vmax.f32 %v1620, 0.0
        %v1653 = vmax.f32 %v1621, 0.0
        %v1654 = vmax.f32 %v1622, 0.0
        %v1655 = vadd.f32 %v1205, %v1623
        %v1656 = vadd.f32 %v1206, %v1624
        %v1657 = vadd.f32 %v1207, %v1625
        %v1658 = vadd.f32 %v1208, %v1626
        %v1659 = vadd.f32 %v1209, %v1627
        %v1660 = vadd.f32 %v1210, %v1628
        %v1661 = vadd.f32 %v1211, %v1629
        %v1662 = vadd.f32 %v1212, %v1630
        %v1663 = vadd.f32 %v1213, %v1631
        %v1664 = vadd.f32 %v1214, %v1632
        %v1665 = vadd.f32 %v1215, %v1633
        %v1666 = vadd.f32 %v1216, %v1634
        %v1667 = vadd.f32 %v1217, %v1635
        %v1668 = vadd.f32 %v1218, %v1636
        %v1669 = vadd.f32 %v1219, %v1637
        %v1670 = vadd.f32 %v1220, %v1638
        %v1671 = vadd.f32 %v1221, %v1639
        %v1672 = vadd.f32 %v1222, %v1640
        %v1673 = vadd.f32 %v1223, %v1641
        %v1674 = vadd.f32 %v1224, %v1642
        %v1675 = vadd.f32 %v1225, %v1643
        %v1676 = vadd.f32 %v1226, %v1644
        %v1677 = vadd.f32 %v1227, %v1645
        %v1678 = vadd.f32 %v1228, %v1646
        %v1679 = vadd.f32 %v1229, %v1647
        %v1680 = vadd.f32 %v1230, %v1648
        %v1681 = vadd.f32 %v1231, %v1649
        %v1682 = vadd.f32 %v1232, %v1650
        %v1683 = vadd.f32 %v1233, %v1651
        %v1684 = vadd.f32 %v1234, %v1652
        %v1685 = vadd.f32 %v1235, %v1653
        %v1686 = vadd.f32 %v1236, %v1654
        %s1687 = scalar_lea.vmem %s720, 256 [#allocation2]
        %v1688 = vld [vmem:[%s1687] sm:$0xf]
        %v1689 = vld [vmem:[%s1687 + $0x4] sm:$0xf]
        %v1690 = vld [vmem:[%s1687 + $0x8] sm:$0xf]
        %v1691 = vld [vmem:[%s1687 + $0xc] sm:$0xf]
        %v1692 = vld [vmem:[%s1687 + $0x10] sm:$0xf]
        %v1693 = vld [vmem:[%s1687 + $0x14] sm:$0xf]
        %v1694 = vld [vmem:[%s1687 + $0x18] sm:$0xf]
        %v1695 = vld [vmem:[%s1687 + $0x1c] sm:$0xf]
        %v1696 = vld [vmem:[%s1687 + $0x20] sm:$0xf]
        %v1697 = vld [vmem:[%s1687 + $0x24] sm:$0xf]
        %v1698 = vld [vmem:[%s1687 + $0x28] sm:$0xf]
        %v1699 = vld [vmem:[%s1687 + $0x2c] sm:$0xf]
        %v1700 = vld [vmem:[%s1687 + $0x30] sm:$0xf]
        %v1701 = vld [vmem:[%s1687 + $0x34] sm:$0xf]
        %v1702 = vld [vmem:[%s1687 + $0x38] sm:$0xf]
        %v1703 = vld [vmem:[%s1687 + $0x3c] sm:$0xf]
        %v1704 = vld [vmem:[%s1687 + $0x40] sm:$0xf]
        %v1705 = vld [vmem:[%s1687 + $0x44] sm:$0xf]
        %v1706 = vld [vmem:[%s1687 + $0x48] sm:$0xf]
        %v1707 = vld [vmem:[%s1687 + $0x4c] sm:$0xf]
        %v1708 = vld [vmem:[%s1687 + $0x50] sm:$0xf]
        %v1709 = vld [vmem:[%s1687 + $0x54] sm:$0xf]
        %v1710 = vld [vmem:[%s1687 + $0x58] sm:$0xf]
        %v1711 = vld [vmem:[%s1687 + $0x5c] sm:$0xf]
        %v1712 = vld [vmem:[%s1687 + $0x60] sm:$0xf]
        %v1713 = vld [vmem:[%s1687 + $0x64] sm:$0xf]
        %v1714 = vld [vmem:[%s1687 + $0x68] sm:$0xf]
        %v1715 = vld [vmem:[%s1687 + $0x6c] sm:$0xf]
        %v1716 = vld [vmem:[%s1687 + $0x70] sm:$0xf]
        %v1717 = vld [vmem:[%s1687 + $0x74] sm:$0xf]
        %v1718 = vld [vmem:[%s1687 + $0x78] sm:$0xf]
        %v1719 = vld [vmem:[%s1687 + $0x7c] sm:$0xf]
        %v1752 = vunpack.c.l.b16 %v1688
        %v1753 = vunpack.c.l.b16 %v1689
        %v1754 = vunpack.c.l.b16 %v1690
        %v1755 = vunpack.c.l.b16 %v1691
        %v1756 = vunpack.c.l.b16 %v1692
        %v1757 = vunpack.c.l.b16 %v1693
        %v1758 = vunpack.c.l.b16 %v1694
        %v1759 = vunpack.c.l.b16 %v1695
        %v1760 = vunpack.c.l.b16 %v1696
        %v1761 = vunpack.c.l.b16 %v1697
        %v1762 = vunpack.c.l.b16 %v1698
        %v1763 = vunpack.c.l.b16 %v1699
        %v1764 = vunpack.c.l.b16 %v1700
        %v1765 = vunpack.c.l.b16 %v1701
        %v1766 = vunpack.c.l.b16 %v1702
        %v1767 = vunpack.c.l.b16 %v1703
        %v1768 = vunpack.c.l.b16 %v1704
        %v1769 = vunpack.c.l.b16 %v1705
        %v1770 = vunpack.c.l.b16 %v1706
        %v1771 = vunpack.c.l.b16 %v1707
        %v1772 = vunpack.c.l.b16 %v1708
        %v1773 = vunpack.c.l.b16 %v1709
        %v1774 = vunpack.c.l.b16 %v1710
        %v1775 = vunpack.c.l.b16 %v1711
        %v1776 = vunpack.c.l.b16 %v1712
        %v1777 = vunpack.c.l.b16 %v1713
        %v1778 = vunpack.c.l.b16 %v1714
        %v1779 = vunpack.c.l.b16 %v1715
        %v1780 = vunpack.c.l.b16 %v1716
        %v1781 = vunpack.c.l.b16 %v1717
        %v1782 = vunpack.c.l.b16 %v1718
        %v1783 = vunpack.c.l.b16 %v1719
        %v1784 = vpack.c.b16 %v1753, %v1752
        %v1785 = vpack.c.b16 %v1755, %v1754
        %v1786 = vpack.c.b16 %v1757, %v1756
        %v1787 = vpack.c.b16 %v1759, %v1758
        %v1788 = vpack.c.b16 %v1761, %v1760
        %v1789 = vpack.c.b16 %v1763, %v1762
        %v1790 = vpack.c.b16 %v1765, %v1764
        %v1791 = vpack.c.b16 %v1767, %v1766
        %v1792 = vpack.c.b16 %v1769, %v1768
        %v1793 = vpack.c.b16 %v1771, %v1770
        %v1794 = vpack.c.b16 %v1773, %v1772
        %v1795 = vpack.c.b16 %v1775, %v1774
        %v1796 = vpack.c.b16 %v1777, %v1776
        %v1797 = vpack.c.b16 %v1779, %v1778
        %v1798 = vpack.c.b16 %v1781, %v1780
        %v1799 = vpack.c.b16 %v1783, %v1782
        %v1801 = vsel %vm880, %v1784, 0
        %v1804 = vsel %vm880, %v1785, 0
        %v1807 = vsel %vm880, %v1786, 0
        %v1810 = vsel %vm880, %v1787, 0
        %v1813 = vsel %vm880, %v1788, 0
        %v1816 = vsel %vm880, %v1789, 0
        %v1819 = vsel %vm880, %v1790, 0
        %v1822 = vsel %vm880, %v1791, 0
        %v1825 = vsel %vm880, %v1792, 0
        %v1828 = vsel %vm880, %v1793, 0
        %v1831 = vsel %vm880, %v1794, 0
        %v1834 = vsel %vm880, %v1795, 0
        %v1837 = vsel %vm880, %v1796, 0
        %v1840 = vsel %vm880, %v1797, 0
        %v1843 = vsel %vm880, %v1798, 0
        %v1846 = vsel %vm880, %v1799, 0
        %1848 = vmatprep.subr.bf16.mxu0 0
        %1849 = vmatpush1.bf16.msra.mxu0 %v877
        %1850 = vmatprep.subr.bf16.mxu0 0
        %1851 = vmatpush1.bf16.msra.mxu0 %v934
        %1852 = vmatprep.subr.bf16.mxu0 0
        %1853 = vmatpush1.bf16.msra.mxu0 0
        %1854 = vmatprep.subr.bf16.mxu0 0
        %1855 = vmatpush1.bf16.msra.mxu0 0
        %1856 = vmatprep.subr.bf16.mxu0 0
        %1857 = vmatpush1.bf16.msra.mxu0 0
        %1858 = vmatprep.subr.bf16.mxu0 0
        %1859 = vmatpush1.bf16.msra.mxu0 0
        %1860 = vmatprep.subr.bf16.mxu0 0
        %1861 = vmatpush1.bf16.msra.mxu0 0
        %1862 = vmatprep.subr.bf16.mxu0 0
        %1863 = vmatpush1.bf16.msra.mxu0 0
        %1864 = vmatprep.subr.bf16.mxu0 0
        %1865 = vmatpush1.bf16.msra.mxu0 0
        %1866 = vmatprep.subr.bf16.mxu0 0
        %1867 = vmatpush1.bf16.msra.mxu0 0
        %1868 = vmatprep.subr.bf16.mxu0 0
        %1869 = vmatpush1.bf16.msra.mxu0 0
        %1870 = vmatprep.subr.bf16.mxu0 0
        %1871 = vmatpush1.bf16.msra.mxu0 0
        %1872 = vmatprep.subr.bf16.mxu0 0
        %1873 = vmatpush1.bf16.msra.mxu0 0
        %1874 = vmatprep.subr.bf16.mxu0 0
        %1875 = vmatpush1.bf16.msra.mxu0 0
        %1876 = vmatprep.subr.bf16.mxu0 0
        %1877 = vmatpush1.bf16.msra.mxu0 0
        %1878 = vmatprep.subr.bf16.mxu0 0
        %1879 = vmatpush1.bf16.msra.mxu0 0
        %1880 = vmatprep.mubr.bf16.mxu0 0
        %1881 = vmatmul.mubr.bf16.gmra.mrb[0].mxu0 %v1801
        %v1882 = vpop.f32.mrb[0].mxu0
        %v1883 = vadd.f32 0.0, %v1882
        %v1884 = vpop.f32.mrb[0].mxu0
        %v1885 = vpop.f32.mrb[0].mxu0
        %v1886 = vadd.f32 0.0, %v1885
        %v1887 = vpop.f32.mrb[0].mxu0
        %1888 = vmatprep.mubr.bf16.mxu0 0
        %1889 = vmatmul.mubr.bf16.gmra.mrb[0].mxu0 %v1804
        %v1890 = vpop.f32.mrb[0].mxu0
        %v1891 = vadd.f32 0.0, %v1890
        %v1892 = vpop.f32.mrb[0].mxu0
        %v1893 = vpop.f32.mrb[0].mxu0
        %v1894 = vadd.f32 0.0, %v1893
        %v1895 = vpop.f32.mrb[0].mxu0
        %1896 = vmatprep.mubr.bf16.mxu0 0
        %1897 = vmatmul.mubr.bf16.gmra.mrb[0].mxu0 %v1807
        %v1898 = vpop.f32.mrb[0].mxu0
        %v1899 = vadd.f32 0.0, %v1898
        %v1900 = vpop.f32.mrb[0].mxu0
        %v1901 = vpop.f32.mrb[0].mxu0
        %v1902 = vadd.f32 0.0, %v1901
        %v1903 = vpop.f32.mrb[0].mxu0
        %1904 = vmatprep.mubr.bf16.mxu0 0
        %1905 = vmatmul.mubr.bf16.gmra.mrb[0].mxu0 %v1810
        %v1906 = vpop.f32.mrb[0].mxu0
        %v1907 = vadd.f32 0.0, %v1906
        %v1908 = vpop.f32.mrb[0].mxu0
        %v1909 = vpop.f32.mrb[0].mxu0
        %v1910 = vadd.f32 0.0, %v1909
        %v1911 = vpop.f32.mrb[0].mxu0
        %1912 = vmatprep.mubr.bf16.mxu0 0
        %1913 = vmatmul.mubr.bf16.gmra.mrb[0].mxu0 %v1813
        %v1914 = vpop.f32.mrb[0].mxu0
        %v1915 = vadd.f32 0.0, %v1914
        %v1916 = vpop.f32.mrb[0].mxu0
        %v1917 = vpop.f32.mrb[0].mxu0
        %v1918 = vadd.f32 0.0, %v1917
        %v1919 = vpop.f32.mrb[0].mxu0
        %1920 = vmatprep.mubr.bf16.mxu0 0
        %1921 = vmatmul.mubr.bf16.gmra.mrb[0].mxu0 %v1816
        %v1922 = vpop.f32.mrb[0].mxu0
        %v1923 = vadd.f32 0.0, %v1922
        %v1924 = vpop.f32.mrb[0].mxu0
        %v1925 = vpop.f32.mrb[0].mxu0
        %v1926 = vadd.f32 0.0, %v1925
        %v1927 = vpop.f32.mrb[0].mxu0
        %1928 = vmatprep.mubr.bf16.mxu0 0
        %1929 = vmatmul.mubr.bf16.gmra.mrb[0].mxu0 %v1819
        %v1930 = vpop.f32.mrb[0].mxu0
        %v1931 = vadd.f32 0.0, %v1930
        %v1932 = vpop.f32.mrb[0].mxu0
        %v1933 = vpop.f32.mrb[0].mxu0
        %v1934 = vadd.f32 0.0, %v1933
        %v1935 = vpop.f32.mrb[0].mxu0
        %1936 = vmatprep.mubr.bf16.mxu0 0
        %1937 = vmatmul.mubr.bf16.gmra.mrb[0].mxu0 %v1822
        %v1938 = vpop.f32.mrb[0].mxu0
        %v1939 = vadd.f32 0.0, %v1938
        %v1940 = vpop.f32.mrb[0].mxu0
        %v1941 = vpop.f32.mrb[0].mxu0
        %v1942 = vadd.f32 0.0, %v1941
        %v1943 = vpop.f32.mrb[0].mxu0
        %1944 = vmatprep.mubr.bf16.mxu0 0
        %1945 = vmatmul.mubr.bf16.gmra.mrb[0].mxu0 %v1825
        %v1946 = vpop.f32.mrb[0].mxu0
        %v1947 = vadd.f32 0.0, %v1946
        %v1948 = vpop.f32.mrb[0].mxu0
        %v1949 = vpop.f32.mrb[0].mxu0
        %v1950 = vadd.f32 0.0, %v1949
        %v1951 = vpop.f32.mrb[0].mxu0
        %1952 = vmatprep.mubr.bf16.mxu0 0
        %1953 = vmatmul.mubr.bf16.gmra.mrb[0].mxu0 %v1828
        %v1954 = vpop.f32.mrb[0].mxu0
        %v1955 = vadd.f32 0.0, %v1954
        %v1956 = vpop.f32.mrb[0].mxu0
        %v1957 = vpop.f32.mrb[0].mxu0
        %v1958 = vadd.f32 0.0, %v1957
        %v1959 = vpop.f32.mrb[0].mxu0
        %1960 = vmatprep.mubr.bf16.mxu0 0
        %1961 = vmatmul.mubr.bf16.gmra.mrb[0].mxu0 %v1831
        %v1962 = vpop.f32.mrb[0].mxu0
        %v1963 = vadd.f32 0.0, %v1962
        %v1964 = vpop.f32.mrb[0].mxu0
        %v1965 = vpop.f32.mrb[0].mxu0
        %v1966 = vadd.f32 0.0, %v1965
        %v1967 = vpop.f32.mrb[0].mxu0
        %1968 = vmatprep.mubr.bf16.mxu0 0
        %1969 = vmatmul.mubr.bf16.gmra.mrb[0].mxu0 %v1834
        %v1970 = vpop.f32.mrb[0].mxu0
        %v1971 = vadd.f32 0.0, %v1970
        %v1972 = vpop.f32.mrb[0].mxu0
        %v1973 = vpop.f32.mrb[0].mxu0
        %v1974 = vadd.f32 0.0, %v1973
        %v1975 = vpop.f32.mrb[0].mxu0
        %1976 = vmatprep.mubr.bf16.mxu0 0
        %1977 = vmatmul.mubr.bf16.gmra.mrb[0].mxu0 %v1837
        %v1978 = vpop.f32.mrb[0].mxu0
        %v1979 = vadd.f32 0.0, %v1978
        %v1980 = vpop.f32.mrb[0].mxu0
        %v1981 = vpop.f32.mrb[0].mxu0
        %v1982 = vadd.f32 0.0, %v1981
        %v1983 = vpop.f32.mrb[0].mxu0
        %1984 = vmatprep.mubr.bf16.mxu0 0
        %1985 = vmatmul.mubr.bf16.gmra.mrb[0].mxu0 %v1840
        %v1986 = vpop.f32.mrb[0].mxu0
        %v1987 = vadd.f32 0.0, %v1986
        %v1988 = vpop.f32.mrb[0].mxu0
        %v1989 = vpop.f32.mrb[0].mxu0
        %v1990 = vadd.f32 0.0, %v1989
        %v1991 = vpop.f32.mrb[0].mxu0
        %1992 = vmatprep.mubr.bf16.mxu0 0
        %1993 = vmatmul.mubr.bf16.gmra.mrb[0].mxu0 %v1843
        %v1994 = vpop.f32.mrb[0].mxu0
        %v1995 = vadd.f32 0.0, %v1994
        %v1996 = vpop.f32.mrb[0].mxu0
        %v1997 = vpop.f32.mrb[0].mxu0
        %v1998 = vadd.f32 0.0, %v1997
        %v1999 = vpop.f32.mrb[0].mxu0
        %2000 = vmatprep.mubr.bf16.mxu0 0
        %2001 = vmatmul.mubr.bf16.gmra.mrb[0].mxu0 %v1846
        %v2002 = vpop.f32.mrb[0].mxu0
        %v2003 = vadd.f32 0.0, %v2002
        %v2004 = vpop.f32.mrb[0].mxu0
        %v2005 = vpop.f32.mrb[0].mxu0
        %v2006 = vadd.f32 0.0, %v2005
        %v2007 = vpop.f32.mrb[0].mxu0
        %2008 = vdwg.mxu0
        %v2009 = vmul.f32 %v1883, %v1101
        %v2010 = vmul.f32 %v1886, %v1101
        %v2011 = vmul.f32 %v1891, %v1101
        %v2012 = vmul.f32 %v1894, %v1101
        %v2013 = vmul.f32 %v1899, %v1101
        %v2014 = vmul.f32 %v1902, %v1101
        %v2015 = vmul.f32 %v1907, %v1101
        %v2016 = vmul.f32 %v1910, %v1101
        %v2017 = vmul.f32 %v1915, %v1101
        %v2018 = vmul.f32 %v1918, %v1101
        %v2019 = vmul.f32 %v1923, %v1101
        %v2020 = vmul.f32 %v1926, %v1101
        %v2021 = vmul.f32 %v1931, %v1101
        %v2022 = vmul.f32 %v1934, %v1101
        %v2023 = vmul.f32 %v1939, %v1101
        %v2024 = vmul.f32 %v1942, %v1101
        %v2025 = vmul.f32 %v1947, %v1101
        %v2026 = vmul.f32 %v1950, %v1101
        %v2027 = vmul.f32 %v1955, %v1101
        %v2028 = vmul.f32 %v1958, %v1101
        %v2029 = vmul.f32 %v1963, %v1101
        %v2030 = vmul.f32 %v1966, %v1101
        %v2031 = vmul.f32 %v1971, %v1101
        %v2032 = vmul.f32 %v1974, %v1101
        %v2033 = vmul.f32 %v1979, %v1101
        %v2034 = vmul.f32 %v1982, %v1101
        %v2035 = vmul.f32 %v1987, %v1101
        %v2036 = vmul.f32 %v1990, %v1101
        %v2037 = vmul.f32 %v1995, %v1101
        %v2038 = vmul.f32 %v1998, %v1101
        %v2039 = vmul.f32 %v2003, %v1101
        %v2040 = vmul.f32 %v2006, %v1101
        %v2041 = vadd.f32 %v2009, %v1139
        %v2042 = vadd.f32 %v2010, %v1139
        %v2043 = vadd.f32 %v2011, %v1139
        %v2044 = vadd.f32 %v2012, %v1139
        %v2045 = vadd.f32 %v2013, %v1139
        %v2046 = vadd.f32 %v2014, %v1139
        %v2047 = vadd.f32 %v2015, %v1139
        %v2048 = vadd.f32 %v2016, %v1139
        %v2049 = vadd.f32 %v2017, %v1139
        %v2050 = vadd.f32 %v2018, %v1139
        %v2051 = vadd.f32 %v2019, %v1139
        %v2052 = vadd.f32 %v2020, %v1139
        %v2053 = vadd.f32 %v2021, %v1139
        %v2054 = vadd.f32 %v2022, %v1139
        %v2055 = vadd.f32 %v2023, %v1139
        %v2056 = vadd.f32 %v2024, %v1139
        %v2057 = vadd.f32 %v2025, %v1139
        %v2058 = vadd.f32 %v2026, %v1139
        %v2059 = vadd.f32 %v2027, %v1139
        %v2060 = vadd.f32 %v2028, %v1139
        %v2061 = vadd.f32 %v2029, %v1139
        %v2062 = vadd.f32 %v2030, %v1139
        %v2063 = vadd.f32 %v2031, %v1139
        %v2064 = vadd.f32 %v2032, %v1139
        %v2065 = vadd.f32 %v2033, %v1139
        %v2066 = vadd.f32 %v2034, %v1139
        %v2067 = vadd.f32 %v2035, %v1139
        %v2068 = vadd.f32 %v2036, %v1139
        %v2069 = vadd.f32 %v2037, %v1139
        %v2070 = vadd.f32 %v2038, %v1139
        %v2071 = vadd.f32 %v2039, %v1139
        %v2072 = vadd.f32 %v2040, %v1139
        %v2073 = vmax.f32 %v2041, 0.0
        %v2074 = vmax.f32 %v2042, 0.0
        %v2075 = vmax.f32 %v2043, 0.0
        %v2076 = vmax.f32 %v2044, 0.0
        %v2077 = vmax.f32 %v2045, 0.0
        %v2078 = vmax.f32 %v2046, 0.0
        %v2079 = vmax.f32 %v2047, 0.0
        %v2080 = vmax.f32 %v2048, 0.0
        %v2081 = vmax.f32 %v2049, 0.0
        %v2082 = vmax.f32 %v2050, 0.0
        %v2083 = vmax.f32 %v2051, 0.0
        %v2084 = vmax.f32 %v2052, 0.0
        %v2085 = vmax.f32 %v2053, 0.0
        %v2086 = vmax.f32 %v2054, 0.0
        %v2087 = vmax.f32 %v2055, 0.0
        %v2088 = vmax.f32 %v2056, 0.0
        %v2089 = vmax.f32 %v2057, 0.0
        %v2090 = vmax.f32 %v2058, 0.0
        %v2091 = vmax.f32 %v2059, 0.0
        %v2092 = vmax.f32 %v2060, 0.0
        %v2093 = vmax.f32 %v2061, 0.0
        %v2094 = vmax.f32 %v2062, 0.0
        %v2095 = vmax.f32 %v2063, 0.0
        %v2096 = vmax.f32 %v2064, 0.0
        %v2097 = vmax.f32 %v2065, 0.0
        %v2098 = vmax.f32 %v2066, 0.0
        %v2099 = vmax.f32 %v2067, 0.0
        %v2100 = vmax.f32 %v2068, 0.0
        %v2101 = vmax.f32 %v2069, 0.0
        %v2102 = vmax.f32 %v2070, 0.0
        %v2103 = vmax.f32 %v2071, 0.0
        %v2104 = vmax.f32 %v2072, 0.0
        %v2105 = vadd.f32 %v1655, %v2073
        %v2106 = vadd.f32 %v1656, %v2074
        %v2107 = vadd.f32 %v1657, %v2075
        %v2108 = vadd.f32 %v1658, %v2076
        %v2109 = vadd.f32 %v1659, %v2077
        %v2110 = vadd.f32 %v1660, %v2078
        %v2111 = vadd.f32 %v1661, %v2079
        %v2112 = vadd.f32 %v1662, %v2080
        %v2113 = vadd.f32 %v1663, %v2081
        %v2114 = vadd.f32 %v1664, %v2082
        %v2115 = vadd.f32 %v1665, %v2083
        %v2116 = vadd.f32 %v1666, %v2084
        %v2117 = vadd.f32 %v1667, %v2085
        %v2118 = vadd.f32 %v1668, %v2086
        %v2119 = vadd.f32 %v1669, %v2087
        %v2120 = vadd.f32 %v1670, %v2088
        %v2121 = vadd.f32 %v1671, %v2089
        %v2122 = vadd.f32 %v1672, %v2090
        %v2123 = vadd.f32 %v1673, %v2091
        %v2124 = vadd.f32 %v1674, %v2092
        %v2125 = vadd.f32 %v1675, %v2093
        %v2126 = vadd.f32 %v1676, %v2094
        %v2127 = vadd.f32 %v1677, %v2095
        %v2128 = vadd.f32 %v1678, %v2096
        %v2129 = vadd.f32 %v1679, %v2097
        %v2130 = vadd.f32 %v1680, %v2098
        %v2131 = vadd.f32 %v1681, %v2099
        %v2132 = vadd.f32 %v1682, %v2100
        %v2133 = vadd.f32 %v1683, %v2101
        %v2134 = vadd.f32 %v1684, %v2102
        %v2135 = vadd.f32 %v1685, %v2103
        %v2136 = vadd.f32 %v1686, %v2104
        %s2137 = scalar_lea.vmem %s720, 384 [#allocation2]
        %v2138 = vld [vmem:[%s2137] sm:$0xf]
        %v2139 = vld [vmem:[%s2137 + $0x4] sm:$0xf]
        %v2140 = vld [vmem:[%s2137 + $0x8] sm:$0xf]
        %v2141 = vld [vmem:[%s2137 + $0xc] sm:$0xf]
        %v2142 = vld [vmem:[%s2137 + $0x10] sm:$0xf]
        %v2143 = vld [vmem:[%s2137 + $0x14] sm:$0xf]
        %v2144 = vld [vmem:[%s2137 + $0x18] sm:$0xf]
        %v2145 = vld [vmem:[%s2137 + $0x1c] sm:$0xf]
        %v2146 = vld [vmem:[%s2137 + $0x20] sm:$0xf]
        %v2147 = vld [vmem:[%s2137 + $0x24] sm:$0xf]
        %v2148 = vld [vmem:[%s2137 + $0x28] sm:$0xf]
        %v2149 = vld [vmem:[%s2137 + $0x2c] sm:$0xf]
        %v2150 = vld [vmem:[%s2137 + $0x30] sm:$0xf]
        %v2151 = vld [vmem:[%s2137 + $0x34] sm:$0xf]
        %v2152 = vld [vmem:[%s2137 + $0x38] sm:$0xf]
        %v2153 = vld [vmem:[%s2137 + $0x3c] sm:$0xf]
        %v2154 = vld [vmem:[%s2137 + $0x40] sm:$0xf]
        %v2155 = vld [vmem:[%s2137 + $0x44] sm:$0xf]
        %v2156 = vld [vmem:[%s2137 + $0x48] sm:$0xf]
        %v2157 = vld [vmem:[%s2137 + $0x4c] sm:$0xf]
        %v2158 = vld [vmem:[%s2137 + $0x50] sm:$0xf]
        %v2159 = vld [vmem:[%s2137 + $0x54] sm:$0xf]
        %v2160 = vld [vmem:[%s2137 + $0x58] sm:$0xf]
        %v2161 = vld [vmem:[%s2137 + $0x5c] sm:$0xf]
        %v2162 = vld [vmem:[%s2137 + $0x60] sm:$0xf]
        %v2163 = vld [vmem:[%s2137 + $0x64] sm:$0xf]
        %v2164 = vld [vmem:[%s2137 + $0x68] sm:$0xf]
        %v2165 = vld [vmem:[%s2137 + $0x6c] sm:$0xf]
        %v2166 = vld [vmem:[%s2137 + $0x70] sm:$0xf]
        %v2167 = vld [vmem:[%s2137 + $0x74] sm:$0xf]
        %v2168 = vld [vmem:[%s2137 + $0x78] sm:$0xf]
        %v2169 = vld [vmem:[%s2137 + $0x7c] sm:$0xf]
        %v2202 = vunpack.c.l.b16 %v2138
        %v2203 = vunpack.c.l.b16 %v2139
        %v2204 = vunpack.c.l.b16 %v2140
        %v2205 = vunpack.c.l.b16 %v2141
        %v2206 = vunpack.c.l.b16 %v2142
        %v2207 = vunpack.c.l.b16 %v2143
        %v2208 = vunpack.c.l.b16 %v2144
        %v2209 = vunpack.c.l.b16 %v2145
        %v2210 = vunpack.c.l.b16 %v2146
        %v2211 = vunpack.c.l.b16 %v2147
        %v2212 = vunpack.c.l.b16 %v2148
        %v2213 = vunpack.c.l.b16 %v2149
        %v2214 = vunpack.c.l.b16 %v2150
        %v2215 = vunpack.c.l.b16 %v2151
        %v2216 = vunpack.c.l.b16 %v2152
        %v2217 = vunpack.c.l.b16 %v2153
        %v2218 = vunpack.c.l.b16 %v2154
        %v2219 = vunpack.c.l.b16 %v2155
        %v2220 = vunpack.c.l.b16 %v2156
        %v2221 = vunpack.c.l.b16 %v2157
        %v2222 = vunpack.c.l.b16 %v2158
        %v2223 = vunpack.c.l.b16 %v2159
        %v2224 = vunpack.c.l.b16 %v2160
        %v2225 = vunpack.c.l.b16 %v2161
        %v2226 = vunpack.c.l.b16 %v2162
        %v2227 = vunpack.c.l.b16 %v2163
        %v2228 = vunpack.c.l.b16 %v2164
        %v2229 = vunpack.c.l.b16 %v2165
        %v2230 = vunpack.c.l.b16 %v2166
        %v2231 = vunpack.c.l.b16 %v2167
        %v2232 = vunpack.c.l.b16 %v2168
        %v2233 = vunpack.c.l.b16 %v2169
        %v2234 = vpack.c.b16 %v2203, %v2202
        %v2235 = vpack.c.b16 %v2205, %v2204
        %v2236 = vpack.c.b16 %v2207, %v2206
        %v2237 = vpack.c.b16 %v2209, %v2208
        %v2238 = vpack.c.b16 %v2211, %v2210
        %v2239 = vpack.c.b16 %v2213, %v2212
        %v2240 = vpack.c.b16 %v2215, %v2214
        %v2241 = vpack.c.b16 %v2217, %v2216
        %v2242 = vpack.c.b16 %v2219, %v2218
        %v2243 = vpack.c.b16 %v2221, %v2220
        %v2244 = vpack.c.b16 %v2223, %v2222
        %v2245 = vpack.c.b16 %v2225, %v2224
        %v2246 = vpack.c.b16 %v2227, %v2226
        %v2247 = vpack.c.b16 %v2229, %v2228
        %v2248 = vpack.c.b16 %v2231, %v2230
        %v2249 = vpack.c.b16 %v2233, %v2232
        %v2251 = vsel %vm880, %v2234, 0
        %v2254 = vsel %vm880, %v2235, 0
        %v2257 = vsel %vm880, %v2236, 0
        %v2260 = vsel %vm880, %v2237, 0
        %v2263 = vsel %vm880, %v2238, 0
        %v2266 = vsel %vm880, %v2239, 0
        %v2269 = vsel %vm880, %v2240, 0
        %v2272 = vsel %vm880, %v2241, 0
        %v2275 = vsel %vm880, %v2242, 0
        %v2278 = vsel %vm880, %v2243, 0
        %v2281 = vsel %vm880, %v2244, 0
        %v2284 = vsel %vm880, %v2245, 0
        %v2287 = vsel %vm880, %v2246, 0
        %v2290 = vsel %vm880, %v2247, 0
        %v2293 = vsel %vm880, %v2248, 0
        %v2296 = vsel %vm880, %v2249, 0
        %2298 = vmatprep.subr.bf16.mxu0 0
        %2299 = vmatpush1.bf16.msra.mxu0 %v877
        %2300 = vmatprep.subr.bf16.mxu0 0
        %2301 = vmatpush1.bf16.msra.mxu0 %v934
        %2302 = vmatprep.subr.bf16.mxu0 0
        %2303 = vmatpush1.bf16.msra.mxu0 0
        %2304 = vmatprep.subr.bf16.mxu0 0
        %2305 = vmatpush1.bf16.msra.mxu0 0
        %2306 = vmatprep.subr.bf16.mxu0 0
        %2307 = vmatpush1.bf16.msra.mxu0 0
        %2308 = vmatprep.subr.bf16.mxu0 0
        %2309 = vmatpush1.bf16.msra.mxu0 0
        %2310 = vmatprep.subr.bf16.mxu0 0
        %2311 = vmatpush1.bf16.msra.mxu0 0
        %2312 = vmatprep.subr.bf16.mxu0 0
        %2313 = vmatpush1.bf16.msra.mxu0 0
        %2314 = vmatprep.subr.bf16.mxu0 0
        %2315 = vmatpush1.bf16.msra.mxu0 0
        %2316 = vmatprep.subr.bf16.mxu0 0
        %2317 = vmatpush1.bf16.msra.mxu0 0
        %2318 = vmatprep.subr.bf16.mxu0 0
        %2319 = vmatpush1.bf16.msra.mxu0 0
        %2320 = vmatprep.subr.bf16.mxu0 0
        %2321 = vmatpush1.bf16.msra.mxu0 0
        %2322 = vmatprep.subr.bf16.mxu0 0
        %2323 = vmatpush1.bf16.msra.mxu0 0
        %2324 = vmatprep.subr.bf16.mxu0 0
        %2325 = vmatpush1.bf16.msra.mxu0 0
        %2326 = vmatprep.subr.bf16.mxu0 0
        %2327 = vmatpush1.bf16.msra.mxu0 0
        %2328 = vmatprep.subr.bf16.mxu0 0
        %2329 = vmatpush1.bf16.msra.mxu0 0
        %2330 = vmatprep.mubr.bf16.mxu0 0
        %2331 = vmatmul.mubr.bf16.gmra.mrb[0].mxu0 %v2251
        %v2332 = vpop.f32.mrb[0].mxu0
        %v2333 = vadd.f32 0.0, %v2332
        %v2334 = vpop.f32.mrb[0].mxu0
        %v2335 = vpop.f32.mrb[0].mxu0
        %v2336 = vadd.f32 0.0, %v2335
        %v2337 = vpop.f32.mrb[0].mxu0
        %2338 = vmatprep.mubr.bf16.mxu0 0
        %2339 = vmatmul.mubr.bf16.gmra.mrb[0].mxu0 %v2254
        %v2340 = vpop.f32.mrb[0].mxu0
        %v2341 = vadd.f32 0.0, %v2340
        %v2342 = vpop.f32.mrb[0].mxu0
        %v2343 = vpop.f32.mrb[0].mxu0
        %v2344 = vadd.f32 0.0, %v2343
        %v2345 = vpop.f32.mrb[0].mxu0
        %2346 = vmatprep.mubr.bf16.mxu0 0
        %2347 = vmatmul.mubr.bf16.gmra.mrb[0].mxu0 %v2257
        %v2348 = vpop.f32.mrb[0].mxu0
        %v2349 = vadd.f32 0.0, %v2348
        %v2350 = vpop.f32.mrb[0].mxu0
        %v2351 = vpop.f32.mrb[0].mxu0
        %v2352 = vadd.f32 0.0, %v2351
        %v2353 = vpop.f32.mrb[0].mxu0
        %2354 = vmatprep.mubr.bf16.mxu0 0
        %2355 = vmatmul.mubr.bf16.gmra.mrb[0].mxu0 %v2260
        %v2356 = vpop.f32.mrb[0].mxu0
        %v2357 = vadd.f32 0.0, %v2356
        %v2358 = vpop.f32.mrb[0].mxu0
        %v2359 = vpop.f32.mrb[0].mxu0
        %v2360 = vadd.f32 0.0, %v2359
        %v2361 = vpop.f32.mrb[0].mxu0
        %2362 = vmatprep.mubr.bf16.mxu0 0
        %2363 = vmatmul.mubr.bf16.gmra.mrb[0].mxu0 %v2263
        %v2364 = vpop.f32.mrb[0].mxu0
        %v2365 = vadd.f32 0.0, %v2364
        %v2366 = vpop.f32.mrb[0].mxu0
        %v2367 = vpop.f32.mrb[0].mxu0
        %v2368 = vadd.f32 0.0, %v2367
        %v2369 = vpop.f32.mrb[0].mxu0
        %2370 = vmatprep.mubr.bf16.mxu0 0
        %2371 = vmatmul.mubr.bf16.gmra.mrb[0].mxu0 %v2266
        %v2372 = vpop.f32.mrb[0].mxu0
        %v2373 = vadd.f32 0.0, %v2372
        %v2374 = vpop.f32.mrb[0].mxu0
        %v2375 = vpop.f32.mrb[0].mxu0
        %v2376 = vadd.f32 0.0, %v2375
        %v2377 = vpop.f32.mrb[0].mxu0
        %2378 = vmatprep.mubr.bf16.mxu0 0
        %2379 = vmatmul.mubr.bf16.gmra.mrb[0].mxu0 %v2269
        %v2380 = vpop.f32.mrb[0].mxu0
        %v2381 = vadd.f32 0.0, %v2380
        %v2382 = vpop.f32.mrb[0].mxu0
        %v2383 = vpop.f32.mrb[0].mxu0
        %v2384 = vadd.f32 0.0, %v2383
        %v2385 = vpop.f32.mrb[0].mxu0
        %2386 = vmatprep.mubr.bf16.mxu0 0
        %2387 = vmatmul.mubr.bf16.gmra.mrb[0].mxu0 %v2272
        %v2388 = vpop.f32.mrb[0].mxu0
        %v2389 = vadd.f32 0.0, %v2388
        %v2390 = vpop.f32.mrb[0].mxu0
        %v2391 = vpop.f32.mrb[0].mxu0
        %v2392 = vadd.f32 0.0, %v2391
        %v2393 = vpop.f32.mrb[0].mxu0
        %2394 = vmatprep.mubr.bf16.mxu0 0
        %2395 = vmatmul.mubr.bf16.gmra.mrb[0].mxu0 %v2275
        %v2396 = vpop.f32.mrb[0].mxu0
        %v2397 = vadd.f32 0.0, %v2396
        %v2398 = vpop.f32.mrb[0].mxu0
        %v2399 = vpop.f32.mrb[0].mxu0
        %v2400 = vadd.f32 0.0, %v2399
        %v2401 = vpop.f32.mrb[0].mxu0
        %2402 = vmatprep.mubr.bf16.mxu0 0
        %2403 = vmatmul.mubr.bf16.gmra.mrb[0].mxu0 %v2278
        %v2404 = vpop.f32.mrb[0].mxu0
        %v2405 = vadd.f32 0.0, %v2404
        %v2406 = vpop.f32.mrb[0].mxu0
        %v2407 = vpop.f32.mrb[0].mxu0
        %v2408 = vadd.f32 0.0, %v2407
        %v2409 = vpop.f32.mrb[0].mxu0
        %2410 = vmatprep.mubr.bf16.mxu0 0
        %2411 = vmatmul.mubr.bf16.gmra.mrb[0].mxu0 %v2281
        %v2412 = vpop.f32.mrb[0].mxu0
        %v2413 = vadd.f32 0.0, %v2412
        %v2414 = vpop.f32.mrb[0].mxu0
        %v2415 = vpop.f32.mrb[0].mxu0
        %v2416 = vadd.f32 0.0, %v2415
        %v2417 = vpop.f32.mrb[0].mxu0
        %2418 = vmatprep.mubr.bf16.mxu0 0
        %2419 = vmatmul.mubr.bf16.gmra.mrb[0].mxu0 %v2284
        %v2420 = vpop.f32.mrb[0].mxu0
        %v2421 = vadd.f32 0.0, %v2420
        %v2422 = vpop.f32.mrb[0].mxu0
        %v2423 = vpop.f32.mrb[0].mxu0
        %v2424 = vadd.f32 0.0, %v2423
        %v2425 = vpop.f32.mrb[0].mxu0
        %2426 = vmatprep.mubr.bf16.mxu0 0
        %2427 = vmatmul.mubr.bf16.gmra.mrb[0].mxu0 %v2287
        %v2428 = vpop.f32.mrb[0].mxu0
        %v2429 = vadd.f32 0.0, %v2428
        %v2430 = vpop.f32.mrb[0].mxu0
        %v2431 = vpop.f32.mrb[0].mxu0
        %v2432 = vadd.f32 0.0, %v2431
        %v2433 = vpop.f32.mrb[0].mxu0
        %2434 = vmatprep.mubr.bf16.mxu0 0
        %2435 = vmatmul.mubr.bf16.gmra.mrb[0].mxu0 %v2290
        %v2436 = vpop.f32.mrb[0].mxu0
        %v2437 = vadd.f32 0.0, %v2436
        %v2438 = vpop.f32.mrb[0].mxu0
        %v2439 = vpop.f32.mrb[0].mxu0
        %v2440 = vadd.f32 0.0, %v2439
        %v2441 = vpop.f32.mrb[0].mxu0
        %2442 = vmatprep.mubr.bf16.mxu0 0
        %2443 = vmatmul.mubr.bf16.gmra.mrb[0].mxu0 %v2293
        %v2444 = vpop.f32.mrb[0].mxu0
        %v2445 = vadd.f32 0.0, %v2444
        %v2446 = vpop.f32.mrb[0].mxu0
        %v2447 = vpop.f32.mrb[0].mxu0
        %v2448 = vadd.f32 0.0, %v2447
        %v2449 = vpop.f32.mrb[0].mxu0
        %2450 = vmatprep.mubr.bf16.mxu0 0
        %2451 = vmatmul.mubr.bf16.gmra.mrb[0].mxu0 %v2296
        %v2452 = vpop.f32.mrb[0].mxu0
        %v2453 = vadd.f32 0.0, %v2452
        %v2454 = vpop.f32.mrb[0].mxu0
        %v2455 = vpop.f32.mrb[0].mxu0
        %v2456 = vadd.f32 0.0, %v2455
        %v2457 = vpop.f32.mrb[0].mxu0
        %2458 = vdwg.mxu0
        %v2459 = vmul.f32 %v2333, %v1101
        %v2460 = vmul.f32 %v2336, %v1101
        %v2461 = vmul.f32 %v2341, %v1101
        %v2462 = vmul.f32 %v2344, %v1101
        %v2463 = vmul.f32 %v2349, %v1101
        %v2464 = vmul.f32 %v2352, %v1101
        %v2465 = vmul.f32 %v2357, %v1101
        %v2466 = vmul.f32 %v2360, %v1101
        %v2467 = vmul.f32 %v2365, %v1101
        %v2468 = vmul.f32 %v2368, %v1101
        %v2469 = vmul.f32 %v2373, %v1101
        %v2470 = vmul.f32 %v2376, %v1101
        %v2471 = vmul.f32 %v2381, %v1101
        %v2472 = vmul.f32 %v2384, %v1101
        %v2473 = vmul.f32 %v2389, %v1101
        %v2474 = vmul.f32 %v2392, %v1101
        %v2475 = vmul.f32 %v2397, %v1101
        %v2476 = vmul.f32 %v2400, %v1101
        %v2477 = vmul.f32 %v2405, %v1101
        %v2478 = vmul.f32 %v2408, %v1101
        %v2479 = vmul.f32 %v2413, %v1101
        %v2480 = vmul.f32 %v2416, %v1101
        %v2481 = vmul.f32 %v2421, %v1101
        %v2482 = vmul.f32 %v2424, %v1101
        %v2483 = vmul.f32 %v2429, %v1101
        %v2484 = vmul.f32 %v2432, %v1101
        %v2485 = vmul.f32 %v2437, %v1101
        %v2486 = vmul.f32 %v2440, %v1101
        %v2487 = vmul.f32 %v2445, %v1101
        %v2488 = vmul.f32 %v2448, %v1101
        %v2489 = vmul.f32 %v2453, %v1101
        %v2490 = vmul.f32 %v2456, %v1101
        %v2491 = vadd.f32 %v2459, %v1139
        %v2492 = vadd.f32 %v2460, %v1139
        %v2493 = vadd.f32 %v2461, %v1139
        %v2494 = vadd.f32 %v2462, %v1139
        %v2495 = vadd.f32 %v2463, %v1139
        %v2496 = vadd.f32 %v2464, %v1139
        %v2497 = vadd.f32 %v2465, %v1139
        %v2498 = vadd.f32 %v2466, %v1139
        %v2499 = vadd.f32 %v2467, %v1139
        %v2500 = vadd.f32 %v2468, %v1139
        %v2501 = vadd.f32 %v2469, %v1139
        %v2502 = vadd.f32 %v2470, %v1139
        %v2503 = vadd.f32 %v2471, %v1139
        %v2504 = vadd.f32 %v2472, %v1139
        %v2505 = vadd.f32 %v2473, %v1139
        %v2506 = vadd.f32 %v2474, %v1139
        %v2507 = vadd.f32 %v2475, %v1139
        %v2508 = vadd.f32 %v2476, %v1139
        %v2509 = vadd.f32 %v2477, %v1139
        %v2510 = vadd.f32 %v2478, %v1139
        %v2511 = vadd.f32 %v2479, %v1139
        %v2512 = vadd.f32 %v2480, %v1139
        %v2513 = vadd.f32 %v2481, %v1139
        %v2514 = vadd.f32 %v2482, %v1139
        %v2515 = vadd.f32 %v2483, %v1139
        %v2516 = vadd.f32 %v2484, %v1139
        %v2517 = vadd.f32 %v2485, %v1139
        %v2518 = vadd.f32 %v2486, %v1139
        %v2519 = vadd.f32 %v2487, %v1139
        %v2520 = vadd.f32 %v2488, %v1139
        %v2521 = vadd.f32 %v2489, %v1139
        %v2522 = vadd.f32 %v2490, %v1139
        %v2523 = vmax.f32 %v2491, 0.0
        %v2524 = vmax.f32 %v2492, 0.0
        %v2525 = vmax.f32 %v2493, 0.0
        %v2526 = vmax.f32 %v2494, 0.0
        %v2527 = vmax.f32 %v2495, 0.0
        %v2528 = vmax.f32 %v2496, 0.0
        %v2529 = vmax.f32 %v2497, 0.0
        %v2530 = vmax.f32 %v2498, 0.0
        %v2531 = vmax.f32 %v2499, 0.0
        %v2532 = vmax.f32 %v2500, 0.0
        %v2533 = vmax.f32 %v2501, 0.0
        %v2534 = vmax.f32 %v2502, 0.0
        %v2535 = vmax.f32 %v2503, 0.0
        %v2536 = vmax.f32 %v2504, 0.0
        %v2537 = vmax.f32 %v2505, 0.0
        %v2538 = vmax.f32 %v2506, 0.0
        %v2539 = vmax.f32 %v2507, 0.0
        %v2540 = vmax.f32 %v2508, 0.0
        %v2541 = vmax.f32 %v2509, 0.0
        %v2542 = vmax.f32 %v2510, 0.0
        %v2543 = vmax.f32 %v2511, 0.0
        %v2544 = vmax.f32 %v2512, 0.0
        %v2545 = vmax.f32 %v2513, 0.0
        %v2546 = vmax.f32 %v2514, 0.0
        %v2547 = vmax.f32 %v2515, 0.0
        %v2548 = vmax.f32 %v2516, 0.0
        %v2549 = vmax.f32 %v2517, 0.0
        %v2550 = vmax.f32 %v2518, 0.0
        %v2551 = vmax.f32 %v2519, 0.0
        %v2552 = vmax.f32 %v2520, 0.0
        %v2553 = vmax.f32 %v2521, 0.0
        %v2554 = vmax.f32 %v2522, 0.0
        %v2555 = vadd.f32 %v2105, %v2523
        %v2556 = vadd.f32 %v2106, %v2524
        %v2557 = vadd.f32 %v2107, %v2525
        %v2558 = vadd.f32 %v2108, %v2526
        %v2559 = vadd.f32 %v2109, %v2527
        %v2560 = vadd.f32 %v2110, %v2528
        %v2561 = vadd.f32 %v2111, %v2529
        %v2562 = vadd.f32 %v2112, %v2530
        %v2563 = vadd.f32 %v2113, %v2531
        %v2564 = vadd.f32 %v2114, %v2532
        %v2565 = vadd.f32 %v2115, %v2533
        %v2566 = vadd.f32 %v2116, %v2534
        %v2567 = vadd.f32 %v2117, %v2535
        %v2568 = vadd.f32 %v2118, %v2536
        %v2569 = vadd.f32 %v2119, %v2537
        %v2570 = vadd.f32 %v2120, %v2538
        %v2571 = vadd.f32 %v2121, %v2539
        %v2572 = vadd.f32 %v2122, %v2540
        %v2573 = vadd.f32 %v2123, %v2541
        %v2574 = vadd.f32 %v2124, %v2542
        %v2575 = vadd.f32 %v2125, %v2543
        %v2576 = vadd.f32 %v2126, %v2544
        %v2577 = vadd.f32 %v2127, %v2545
        %v2578 = vadd.f32 %v2128, %v2546
        %v2579 = vadd.f32 %v2129, %v2547
        %v2580 = vadd.f32 %v2130, %v2548
        %v2581 = vadd.f32 %v2131, %v2549
        %v2582 = vadd.f32 %v2132, %v2550
        %v2583 = vadd.f32 %v2133, %v2551
        %v2584 = vadd.f32 %v2134, %v2552
        %v2585 = vadd.f32 %v2135, %v2553
        %v2586 = vadd.f32 %v2136, %v2554
        %v2587 = vmul.f32 %v2555, 0.25
        %v2588 = vmul.f32 %v2556, 0.25
        %v2589 = vmul.f32 %v2557, 0.25
        %v2590 = vmul.f32 %v2558, 0.25
        %v2591 = vmul.f32 %v2559, 0.25
        %v2592 = vmul.f32 %v2560, 0.25
        %v2593 = vmul.f32 %v2561, 0.25
        %v2594 = vmul.f32 %v2562, 0.25
        %v2595 = vmul.f32 %v2563, 0.25
        %v2596 = vmul.f32 %v2564, 0.25
        %v2597 = vmul.f32 %v2565, 0.25
        %v2598 = vmul.f32 %v2566, 0.25
        %v2599 = vmul.f32 %v2567, 0.25
        %v2600 = vmul.f32 %v2568, 0.25
        %v2601 = vmul.f32 %v2569, 0.25
        %v2602 = vmul.f32 %v2570, 0.25
        %v2603 = vmul.f32 %v2571, 0.25
        %v2604 = vmul.f32 %v2572, 0.25
        %v2605 = vmul.f32 %v2573, 0.25
        %v2606 = vmul.f32 %v2574, 0.25
        %v2607 = vmul.f32 %v2575, 0.25
        %v2608 = vmul.f32 %v2576, 0.25
        %v2609 = vmul.f32 %v2577, 0.25
        %v2610 = vmul.f32 %v2578, 0.25
        %v2611 = vmul.f32 %v2579, 0.25
        %v2612 = vmul.f32 %v2580, 0.25
        %v2613 = vmul.f32 %v2581, 0.25
        %v2614 = vmul.f32 %v2582, 0.25
        %v2615 = vmul.f32 %v2583, 0.25
        %v2616 = vmul.f32 %v2584, 0.25
        %v2617 = vmul.f32 %v2585, 0.25
        %v2618 = vmul.f32 %v2586, 0.25
        %v2619 = vpack.c.bf16 %v2588, %v2587
        %v2620 = vpack.c.bf16 %v2590, %v2589
        %v2621 = vpack.c.bf16 %v2592, %v2591
        %v2622 = vpack.c.bf16 %v2594, %v2593
        %v2623 = vpack.c.bf16 %v2596, %v2595
        %v2624 = vpack.c.bf16 %v2598, %v2597
        %v2625 = vpack.c.bf16 %v2600, %v2599
        %v2626 = vpack.c.bf16 %v2602, %v2601
        %v2627 = vpack.c.bf16 %v2604, %v2603
        %v2628 = vpack.c.bf16 %v2606, %v2605
        %v2629 = vpack.c.bf16 %v2608, %v2607
        %v2630 = vpack.c.bf16 %v2610, %v2609
        %v2631 = vpack.c.bf16 %v2612, %v2611
        %v2632 = vpack.c.bf16 %v2614, %v2613
        %v2633 = vpack.c.bf16 %v2616, %v2615
        %v2634 = vpack.c.bf16 %v2618, %v2617
        %v2651 = vunpack.c.l.b16 %v2619
        %v2652 = vunpack.c.h.b16 %v2619
        %v2653 = vunpack.c.l.b16 %v2620
        %v2654 = vunpack.c.h.b16 %v2620
        %v2655 = vunpack.c.l.b16 %v2621
        %v2656 = vunpack.c.h.b16 %v2621
        %v2657 = vunpack.c.l.b16 %v2622
        %v2658 = vunpack.c.h.b16 %v2622
        %v2659 = vunpack.c.l.b16 %v2623
        %v2660 = vunpack.c.h.b16 %v2623
        %v2661 = vunpack.c.l.b16 %v2624
        %v2662 = vunpack.c.h.b16 %v2624
        %v2663 = vunpack.c.l.b16 %v2625
        %v2664 = vunpack.c.h.b16 %v2625
        %v2665 = vunpack.c.l.b16 %v2626
        %v2666 = vunpack.c.h.b16 %v2626
        %v2667 = vunpack.c.l.b16 %v2627
        %v2668 = vunpack.c.h.b16 %v2627
        %v2669 = vunpack.c.l.b16 %v2628
        %v2670 = vunpack.c.h.b16 %v2628
        %v2671 = vunpack.c.l.b16 %v2629
        %v2672 = vunpack.c.h.b16 %v2629
        %v2673 = vunpack.c.l.b16 %v2630
        %v2674 = vunpack.c.h.b16 %v2630
        %v2675 = vunpack.c.l.b16 %v2631
        %v2676 = vunpack.c.h.b16 %v2631
        %v2677 = vunpack.c.l.b16 %v2632
        %v2678 = vunpack.c.h.b16 %v2632
        %v2679 = vunpack.c.l.b16 %v2633
        %v2680 = vunpack.c.h.b16 %v2633
        %v2681 = vunpack.c.l.b16 %v2634
        %v2682 = vunpack.c.h.b16 %v2634
        %v2683 = vpack.c.b16 %v2651, %v2651
        %v2684 = vpack.c.b16 %v2652, %v2652
        %v2685 = vpack.c.b16 %v2653, %v2653
        %v2686 = vpack.c.b16 %v2654, %v2654
        %v2687 = vpack.c.b16 %v2655, %v2655
        %v2688 = vpack.c.b16 %v2656, %v2656
        %v2689 = vpack.c.b16 %v2657, %v2657
        %v2690 = vpack.c.b16 %v2658, %v2658
        %v2691 = vpack.c.b16 %v2659, %v2659
        %v2692 = vpack.c.b16 %v2660, %v2660
        %v2693 = vpack.c.b16 %v2661, %v2661
        %v2694 = vpack.c.b16 %v2662, %v2662
        %v2695 = vpack.c.b16 %v2663, %v2663
        %v2696 = vpack.c.b16 %v2664, %v2664
        %v2697 = vpack.c.b16 %v2665, %v2665
        %v2698 = vpack.c.b16 %v2666, %v2666
        %v2699 = vpack.c.b16 %v2667, %v2667
        %v2700 = vpack.c.b16 %v2668, %v2668
        %v2701 = vpack.c.b16 %v2669, %v2669
        %v2702 = vpack.c.b16 %v2670, %v2670
        %v2703 = vpack.c.b16 %v2671, %v2671
        %v2704 = vpack.c.b16 %v2672, %v2672
        %v2705 = vpack.c.b16 %v2673, %v2673
        %v2706 = vpack.c.b16 %v2674, %v2674
        %v2707 = vpack.c.b16 %v2675, %v2675
        %v2708 = vpack.c.b16 %v2676, %v2676
        %v2709 = vpack.c.b16 %v2677, %v2677
        %v2710 = vpack.c.b16 %v2678, %v2678
        %v2711 = vpack.c.b16 %v2679, %v2679
        %v2712 = vpack.c.b16 %v2680, %v2680
        %v2713 = vpack.c.b16 %v2681, %v2681
        %v2714 = vpack.c.b16 %v2682, %v2682
        %vm2747 = vcmask 519168
        %2748 = vst.msk [vmem:[%s748] sm:$0xf] %vm2747, %v2683
        %2749 = vst.msk [vmem:[%s748 + $0x4] sm:$0xf] %vm2747, %v2684
        %2750 = vst.msk [vmem:[%s748 + $0x8] sm:$0xf] %vm2747, %v2685
        %2751 = vst.msk [vmem:[%s748 + $0xc] sm:$0xf] %vm2747, %v2686
        %2752 = vst.msk [vmem:[%s748 + $0x10] sm:$0xf] %vm2747, %v2687
        %2753 = vst.msk [vmem:[%s748 + $0x14] sm:$0xf] %vm2747, %v2688
        %2754 = vst.msk [vmem:[%s748 + $0x18] sm:$0xf] %vm2747, %v2689
        %2755 = vst.msk [vmem:[%s748 + $0x1c] sm:$0xf] %vm2747, %v2690
        %2756 = vst.msk [vmem:[%s748 + $0x20] sm:$0xf] %vm2747, %v2691
        %2757 = vst.msk [vmem:[%s748 + $0x24] sm:$0xf] %vm2747, %v2692
        %2758 = vst.msk [vmem:[%s748 + $0x28] sm:$0xf] %vm2747, %v2693
        %2759 = vst.msk [vmem:[%s748 + $0x2c] sm:$0xf] %vm2747, %v2694
        %2760 = vst.msk [vmem:[%s748 + $0x30] sm:$0xf] %vm2747, %v2695
        %2761 = vst.msk [vmem:[%s748 + $0x34] sm:$0xf] %vm2747, %v2696
        %2762 = vst.msk [vmem:[%s748 + $0x38] sm:$0xf] %vm2747, %v2697
        %2763 = vst.msk [vmem:[%s748 + $0x3c] sm:$0xf] %vm2747, %v2698
        %2764 = vst.msk [vmem:[%s748 + $0x40] sm:$0xf] %vm2747, %v2699
        %2765 = vst.msk [vmem:[%s748 + $0x44] sm:$0xf] %vm2747, %v2700
        %2766 = vst.msk [vmem:[%s748 + $0x48] sm:$0xf] %vm2747, %v2701
        %2767 = vst.msk [vmem:[%s748 + $0x4c] sm:$0xf] %vm2747, %v2702
        %2768 = vst.msk [vmem:[%s748 + $0x50] sm:$0xf] %vm2747, %v2703
        %2769 = vst.msk [vmem:[%s748 + $0x54] sm:$0xf] %vm2747, %v2704
        %2770 = vst.msk [vmem:[%s748 + $0x58] sm:$0xf] %vm2747, %v2705
        %2771 = vst.msk [vmem:[%s748 + $0x5c] sm:$0xf] %vm2747, %v2706
        %2772 = vst.msk [vmem:[%s748 + $0x60] sm:$0xf] %vm2747, %v2707
        %2773 = vst.msk [vmem:[%s748 + $0x64] sm:$0xf] %vm2747, %v2708
        %2774 = vst.msk [vmem:[%s748 + $0x68] sm:$0xf] %vm2747, %v2709
        %2775 = vst.msk [vmem:[%s748 + $0x6c] sm:$0xf] %vm2747, %v2710
        %2776 = vst.msk [vmem:[%s748 + $0x70] sm:$0xf] %vm2747, %v2711
        %2777 = vst.msk [vmem:[%s748 + $0x74] sm:$0xf] %vm2747, %v2712
        %2778 = vst.msk [vmem:[%s748 + $0x78] sm:$0xf] %vm2747, %v2713
        %2779 = vst.msk [vmem:[%s748 + $0x7c] sm:$0xf] %vm2747, %v2714
        %s2780 = smul.u32 32, %s15
        %p2781 = scmp.lt.s32.totalorder %s2780, 127
        %s2782 = scalar_select %p2781, %s2780, 127
        %s2783 = smul.addr %s2782, 4
        %s2784 = scalar_lea.vmem %s4, %s2783
        // Predicated region
        $region78: #{tpu_custom_call.1} parent=72 // pred_check
          %p2785 = pneg %p122
        $region79: #{tpu_custom_call.1} parent=72 // pred_check_branch
          %2787 = sbr.rel (%p2785) target = $region81
        $region80: #{tpu_custom_call.1} parent=72 // pred_region
          %s2788 = smul.u32 32, %s15
        $region81: #{tpu_custom_call.1} parent=72 // pred_fallthru
          _
      $region73: #{tpu_custom_call.1} parent=5 // pred_fallthru
        _
      %p2789 = scmp.le.s32.totalorder 2, %s10
      // Predicated region
      $region82: #{tpu_custom_call.1} parent=5 // pred_check
        %p2790 = pneg %p2789
      $region83: #{tpu_custom_call.1} parent=5 // pred_check_branch
        %2792 = sbr.rel (%p2790) target = $region85
      $region84: #{tpu_custom_call.1} parent=5 // pred_region
        %s2793 = ssub.s32 %s10, 2
        // Predicated region
        $region86: #{tpu_custom_call.1} parent=84 // pred_check
          %p2794 = pneg %p128
        $region87: #{tpu_custom_call.1} parent=84 // pred_check_branch
          %2796 = sbr.rel (%p2794) target = $region89
        $region88: #{tpu_custom_call.1} parent=84 // pred_region
          %s2797 = smul.u32 32, %s16
          %p2798 = scmp.lt.s32.totalorder %s2797, 127
          %s2799 = scalar_select %p2798, %s2797, 127
          %s2800 = smul.addr %s2799, 4
          %s2801 = scalar_lea.vmem %s4, %s2800
        $region89: #{tpu_custom_call.1} parent=84 // pred_fallthru
          _
      $region85: #{tpu_custom_call.1} parent=5 // pred_fallthru
        _
    $region6: #{tpu_custom_call.1} parent=1 // loop_footer
      %s14 = sadd.s32 1, %s10
    $region7: #{tpu_custom_call.1} parent=1 // loop_footer_branch
      %9 = sbr.rel target = $region3
    $region8: #{tpu_custom_call.1} parent=1 // loop_exit
      _

</llo_original>
